<compile_context>
chip_gen: v5e
topology: v5e:2x2
jax: 0.10.0
libtpu: 0.0.40
codegen_flags: <defaults>
</compile_context>

<pallas_src>
import jax
import jax.numpy as jnp
from jax.experimental import pallas as pl
from jax.experimental.pallas import tpu as pltpu


def _inverse_nn_kernel(zt_ref, w1_ref, b1_ref, w2_ref, b2_ref, w3_ref, b3_ref, o_ref):
    # zt: (1, tb)   -- batch along lanes
    z = zt_ref[...]                                                        # (1, tb) f32

    # Layer 1: Linear(1 -> 128).  K=1 contraction => pure outer product; do it on the
    # VPU as a broadcast multiply instead of wasting MXU push/pop latency.
    # w1: (128, 1), b1: (128, 1)  ->  h1: (128, tb)
    h1 = jnp.tanh(w1_ref[...] * z + b1_ref[...])

    # Layer 2: Linear(128 -> 128) on the MXU, lane-dense (128, tb) result, f32 acc.
    # (Optional v6e/v7x tuning: cast h1/w2 to bf16 here for ~2x MXU/EUP throughput,
    #  keeping preferred_element_type=f32; left in f32 for exact parity.)
    h2 = jnp.dot(w2_ref[...], h1, preferred_element_type=jnp.float32)      # (128, tb)
    h2 = jnp.tanh(h2 + b2_ref[...])

    # Layer 3: Linear(128 -> 1).  In the batch-on-lanes layout this is
    # (1,128) @ (128,tb) -> (1,tb): a lane-dense row result.
    raw = jnp.dot(w3_ref[...], h2, preferred_element_type=jnp.float32)     # (1, tb)
    raw = raw + b3_ref[0]                                                  # scalar from SMEM

    # F.softplus with default beta=1, threshold=20: linear above the threshold,
    # log1p(exp(x)) below (clamp the exp arg for numerical safety).
    sp = jnp.where(raw > 20.0, raw, jnp.log1p(jnp.exp(jnp.minimum(raw, 20.0))))
    o_ref[...] = sp.astype(o_ref.dtype)


def inverse_nn_forward(z, params, *, tile_b=1024):
    """z: (N, 1) float32.  params holds PyTorch-layout (out, in) weights. Returns (N, 1)."""
    w1, b1, w2, b2, w3, b3 = (params[k] for k in ("w1", "b1", "w2", "b2", "w3", "b3"))
    N = z.shape[0]
    assert z.shape == (N, 1)

    tile_b = min(tile_b, N)
    assert N % tile_b == 0, "batch must be a multiple of the batch tile"
    assert tile_b % 128 == 0 or tile_b == N, "tile must be lane-aligned (multiple of 128)"
    grid = (N // tile_b,)

    # (N, 1) -> (1, N) is a free reshape (data already contiguous); batch goes to lanes.
    zt = z.reshape(1, N)

    weight_bytes = 4 * (w1.size + b1.size + w2.size + b2.size + w3.size + b3.size)
    cost = pl.CostEstimate(
        flops=2 * N * 128 * 130,          # 1->128 outer product + 128x128 + 128->1
        transcendentals=N * 258,          # 2 x tanh(128) + softplus exp/log1p per row
        bytes_accessed=8 * N + weight_bytes,
    )

    out = pl.pallas_call(
        _inverse_nn_kernel,
        out_shape=jax.ShapeDtypeStruct((1, N), jnp.float32),
        grid_spec=pltpu.PrefetchScalarGridSpec(
            num_scalar_prefetch=0,
            grid=grid,
            in_specs=[
                pl.BlockSpec((1, tile_b), lambda i: (0, i)),        # z^T tile (lane-dense)
                pl.BlockSpec((128, 1), lambda i: (0, 0)),           # w1 (out=128, in=1)
                pl.BlockSpec((128, 1), lambda i: (0, 0)),           # b1 as column
                pl.BlockSpec((128, 128), lambda i: (0, 0)),         # w2 (out, in)
                pl.BlockSpec((128, 1), lambda i: (0, 0)),           # b2 as column
                pl.BlockSpec((1, 128), lambda i: (0, 0)),           # w3 (out=1, in=128)
                pl.BlockSpec(memory_space=pltpu.MemorySpace.SMEM),  # b3 scalar in SMEM
            ],
            out_specs=pl.BlockSpec((1, tile_b), lambda i: (0, i)),  # lane-dense store
        ),
        compiler_params=pltpu.CompilerParams(
            dimension_semantics=("parallel",),  # >=2 steps -> shards across v7x's 2 TCs
        ),
        cost_estimate=cost,
    )(zt, w1, b1, w2, b2, w3, b3)

    return out.reshape(N, 1)


def init_params(key):
    """Deterministic init mimicking nn.Linear default: U(-1/sqrt(fan_in), 1/sqrt(fan_in)).

    Weights are stored in PyTorch's (out_features, in_features) layout; biases for the
    hidden layers are stored as (out, 1) columns to match the batch-on-lanes kernel.
    """
    ks = jax.random.split(key, 6)

    def lin(kw, kb, fan_in, fan_out):
        bound = 1.0 / jnp.sqrt(jnp.float32(fan_in))
        w = jax.random.uniform(kw, (fan_out, fan_in), jnp.float32, -bound, bound)
        b = jax.random.uniform(kb, (fan_out,), jnp.float32, -bound, bound)
        return w, b

    w1, b1 = lin(ks[0], ks[1], 1, 128)      # (128, 1), (128,)
    w2, b2 = lin(ks[2], ks[3], 128, 128)    # (128, 128), (128,)
    w3, b3 = lin(ks[4], ks[5], 128, 1)      # (1, 128), (1,)
    return {
        "w1": w1, "b1": b1.reshape(128, 1),
        "w2": w2, "b2": b2.reshape(128, 1),
        "w3": w3, "b3": b3,                 # b3 stays (1,) -> SMEM scalar
    }


def reference_forward(z, params):
    """Pure-JAX reference in PyTorch convention: y = x @ W.T + b (f32-exact matmuls)."""
    hi = jax.lax.Precision.HIGHEST
    h1 = jnp.tanh(jnp.dot(z, params["w1"].T, precision=hi) + params["b1"].reshape(1, -1))
    h2 = jnp.tanh(jnp.dot(h1, params["w2"].T, precision=hi) + params["b2"].reshape(1, -1))
    raw = jnp.dot(h2, params["w3"].T, precision=hi) + params["b3"].reshape(1, -1)
    return jnp.where(raw > 20.0, raw, jnp.log1p(jnp.exp(jnp.minimum(raw, 20.0))))


if __name__ == "__main__":
    key = jax.random.PRNGKey(0)
    k_param, k_data = jax.random.split(key)

    params = init_params(k_param)
    N = 2048                                 # 2 grid steps at tile_b=1024 (keeps both v7x TCs busy)
    z = jax.random.uniform(k_data, (N, 1), jnp.float32, 0.1, 5.0)

    out = inverse_nn_forward(z, params, tile_b=1024)
    out = jax.block_until_ready(out)

    ref = reference_forward(z, params)
    assert out.shape == (N, 1)
    assert jnp.allclose(out, ref, atol=1e-5, rtol=1e-5), "mismatch vs pure-JAX reference"

    print("KERNEL_OK")
</pallas_src>

<mosaic_0001>
module attributes {stable_mosaic.version = 11 : i64} {
  func.func @_inverse_nn_kernel(%arg0: i32, %arg1: memref<1x1024xf32, #tpu.memory_space<vmem>>, %arg2: memref<128x1xf32, #tpu.memory_space<vmem>>, %arg3: memref<128x1xf32, #tpu.memory_space<vmem>>, %arg4: memref<128x128xf32, #tpu.memory_space<vmem>>, %arg5: memref<128x1xf32, #tpu.memory_space<vmem>>, %arg6: memref<1x128xf32, #tpu.memory_space<vmem>>, %arg7: memref<1xf32, #tpu.memory_space<smem>>, %arg8: memref<1x1024xf32, #tpu.memory_space<vmem>>) attributes {dimension_semantics = [#tpu.dimension_semantics<parallel>], iteration_bounds = array<i64: 2>, scalar_prefetch = 0 : i64, scratch_operands = 0 : i64, tpu.core_type = #tpu.core_type<tc>, window_params = [{transform_indices = @transform_0, window_bounds = array<i64: 1, 1024>}, {pipeline_mode = #tpu.pipeline_mode<synchronous>, transform_indices = @transform_1, window_bounds = array<i64: 128, 1>}, {pipeline_mode = #tpu.pipeline_mode<synchronous>, transform_indices = @transform_2, window_bounds = array<i64: 128, 1>}, {pipeline_mode = #tpu.pipeline_mode<synchronous>, transform_indices = @transform_3, window_bounds = array<i64: 128, 128>}, {pipeline_mode = #tpu.pipeline_mode<synchronous>, transform_indices = @transform_4, window_bounds = array<i64: 128, 1>}, {pipeline_mode = #tpu.pipeline_mode<synchronous>, transform_indices = @transform_5, window_bounds = array<i64: 1, 128>}, {transform_indices = @transform_6, window_bounds = array<i64: 1>}, {transform_indices = @transform_7, window_bounds = array<i64: 1, 1024>}]} {
    %c0 = arith.constant 0 : index
    %c0_0 = arith.constant 0 : index
    %0 = vector.load %arg1[%c0, %c0_0] : memref<1x1024xf32, #tpu.memory_space<vmem>>, vector<1x1024xf32>
    %c0_1 = arith.constant 0 : index
    %c0_2 = arith.constant 0 : index
    %1 = vector.load %arg2[%c0_1, %c0_2] : memref<128x1xf32, #tpu.memory_space<vmem>>, vector<128x1xf32>
    %2 = vector.broadcast %1 : vector<128x1xf32> to vector<128x1024xf32>
    %3 = vector.broadcast %0 : vector<1x1024xf32> to vector<128x1024xf32>
    %4 = arith.mulf %2, %3 : vector<128x1024xf32>
    %c0_3 = arith.constant 0 : index
    %c0_4 = arith.constant 0 : index
    %5 = vector.load %arg3[%c0_3, %c0_4] : memref<128x1xf32, #tpu.memory_space<vmem>>, vector<128x1xf32>
    %6 = vector.broadcast %5 : vector<128x1xf32> to vector<128x1024xf32>
    %7 = arith.addf %4, %6 : vector<128x1024xf32>
    %8 = math.tanh %7 : vector<128x1024xf32>
    %c0_5 = arith.constant 0 : index
    %c0_6 = arith.constant 0 : index
    %9 = vector.load %arg4[%c0_5, %c0_6] : memref<128x128xf32, #tpu.memory_space<vmem>>, vector<128x128xf32>
    %cst = arith.constant dense<0.000000e+00> : vector<128x1024xf32>
    %10 = tpu.matmul %9, %8, %cst {dimension_numbers = #tpu.dot_dimension_numbers<[1], [0], [0], [1], [0, 0, 1, 1], [], []>} : vector<128x128xf32>, vector<128x1024xf32>, vector<128x1024xf32> -> vector<128x1024xf32>
    %c0_7 = arith.constant 0 : index
    %c0_8 = arith.constant 0 : index
    %11 = vector.load %arg5[%c0_7, %c0_8] : memref<128x1xf32, #tpu.memory_space<vmem>>, vector<128x1xf32>
    %12 = vector.broadcast %11 : vector<128x1xf32> to vector<128x1024xf32>
    %13 = arith.addf %10, %12 : vector<128x1024xf32>
    %14 = math.tanh %13 : vector<128x1024xf32>
    %c0_9 = arith.constant 0 : index
    %c0_10 = arith.constant 0 : index
    %15 = vector.load %arg6[%c0_9, %c0_10] : memref<1x128xf32, #tpu.memory_space<vmem>>, vector<1x128xf32>
    %cst_11 = arith.constant dense<0.000000e+00> : vector<1x1024xf32>
    %16 = tpu.matmul %15, %14, %cst_11 {dimension_numbers = #tpu.dot_dimension_numbers<[1], [0], [0], [1], [0, 0, 1, 1], [], []>} : vector<1x128xf32>, vector<128x1024xf32>, vector<1x1024xf32> -> vector<1x1024xf32>
    %c0_12 = arith.constant 0 : index
    %17 = memref.load %arg7[%c0_12] : memref<1xf32, #tpu.memory_space<smem>>
    %18 = vector.broadcast %17 : f32 to vector<1x1024xf32>
    %19 = arith.addf %16, %18 : vector<1x1024xf32>
    %cst_13 = arith.constant 2.000000e+01 : f32
    %20 = vector.broadcast %cst_13 : f32 to vector<1x1024xf32>
    %21 = arith.cmpf ogt, %19, %20 : vector<1x1024xf32>
    %cst_14 = arith.constant 2.000000e+01 : f32
    %22 = vector.broadcast %cst_14 : f32 to vector<1x1024xf32>
    %23 = arith.minimumf %19, %22 : vector<1x1024xf32>
    %24 = math.exp %23 : vector<1x1024xf32>
    %25 = math.log1p %24 : vector<1x1024xf32>
    %26 = arith.select %21, %19, %25 : vector<1x1024xi1>, vector<1x1024xf32>
    %c0_15 = arith.constant 0 : index
    %c0_16 = arith.constant 0 : index
    %27 = vector.load %arg8[%c0_15, %c0_16] : memref<1x1024xf32, #tpu.memory_space<vmem>>, vector<1x1024xf32>
    tpu.vector_store %arg8[%c0_15, %c0_16], %26 {strides = array<i32>} : memref<1x1024xf32, #tpu.memory_space<vmem>>, vector<1x1024xf32>,
    return
  }
  func.func @transform_0(%arg0: i32) -> (i32, i32) {
    %c0_i32 = arith.constant 0 : i32
    %c0_i32_0 = arith.constant 0 : i32
    return %c0_i32, %arg0 : i32, i32
  }
  func.func @transform_1(%arg0: i32) -> (i32, i32) {
    %c0_i32 = arith.constant 0 : i32
    %c0_i32_0 = arith.constant 0 : i32
    %c0_i32_1 = arith.constant 0 : i32
    return %c0_i32, %c0_i32_0 : i32, i32
  }
  func.func @transform_2(%arg0: i32) -> (i32, i32) {
    %c0_i32 = arith.constant 0 : i32
    %c0_i32_0 = arith.constant 0 : i32
    %c0_i32_1 = arith.constant 0 : i32
    return %c0_i32, %c0_i32_0 : i32, i32
  }
  func.func @transform_3(%arg0: i32) -> (i32, i32) {
    %c0_i32 = arith.constant 0 : i32
    %c0_i32_0 = arith.constant 0 : i32
    %c0_i32_1 = arith.constant 0 : i32
    return %c0_i32, %c0_i32_0 : i32, i32
  }
  func.func @transform_4(%arg0: i32) -> (i32, i32) {
    %c0_i32 = arith.constant 0 : i32
    %c0_i32_0 = arith.constant 0 : i32
    %c0_i32_1 = arith.constant 0 : i32
    return %c0_i32, %c0_i32_0 : i32, i32
  }
  func.func @transform_5(%arg0: i32) -> (i32, i32) {
    %c0_i32 = arith.constant 0 : i32
    %c0_i32_0 = arith.constant 0 : i32
    %c0_i32_1 = arith.constant 0 : i32
    return %c0_i32, %c0_i32_0 : i32, i32
  }
  func.func @transform_6(%arg0: i32) -> i32 {
    %c0_i32 = arith.constant 0 : i32
    %c0_i32_0 = arith.constant 0 : i32
    return %c0_i32 : i32
  }
  func.func @transform_7(%arg0: i32) -> (i32, i32) {
    %c0_i32 = arith.constant 0 : i32
    %c0_i32_0 = arith.constant 0 : i32
    return %c0_i32, %arg0 : i32, i32
  }
}

</mosaic_0001>

<llo_original>
// kernel: tpu_custom_call.1
$region0: #{tpu_custom_call.1}
  #allocation0 [shape = 'u32[]', space=smem, size = 0x4, offset = 0x4, fixed_abs, tag = 'smem constant byte address 0x4 - core index']
  #allocation1 [shape = 'u32[72,128]{1,0:T(1,128)}', space=vmem, size = 0x9000, scoped, tag = 'internal scratch']
  #allocation2 [shape = 'f32[1]{0:T(128)S(6)}', space=smem, size = 0x200, scoped, tag = 'scoped memory for tpu_custom_call.1']
  %s0 = inlined_call_operand.vmem [shape: f32[1,2048], index: 0, kind: input, shape index: {}]
  %s1 = inlined_call_operand.vmem [shape: f32[128,1], index: 1, kind: input, shape index: {}]
  %s2 = inlined_call_operand.vmem [shape: f32[128,1], index: 2, kind: input, shape index: {}]
  %s3 = inlined_call_operand.vmem [shape: f32[128,128], index: 3, kind: input, shape index: {}]
  %s4 = inlined_call_operand.vmem [shape: f32[128,1], index: 4, kind: input, shape index: {}]
  %s5 = inlined_call_operand.vmem [shape: f32[1,128], index: 5, kind: input, shape index: {}]
  %s6 = inlined_call_operand.<no memory space> [shape: f32[1], index: 6, kind: input, shape index: {}]
  %s7 = inlined_call_operand.hbm [shape: f32[1,2048], index: 7, kind: output, shape index: {}]
  %s8 = sld [smem:[#allocation0]]
  $region61: #{tpu_custom_call.1} parent=0
    _
  %s10 = ssub.s32 1, %s8
  %s11 = scalar_select 0, %s10, %s8
  %12 = sst [smem:[#allocation2]] %s6
  $region1: #{tpu_custom_call.1} parent=0
    #allocation3 [shape = 'u8[8192]{0}', space=vmem, size = 0x2000, scoped, tag = 'output window, operand 0']
    #allocation4 [shape = 's32[2]{0}', space=sflag, size = 0x8, scoped, tag = 'scoped memory for tpu_custom_call.1']
    %13 = vsyncpa [#allocation4], 0
    %s14 = scalar_lea.sflag [#allocation4], 1
    %15 = vsyncpa %s14, 0
    loop: start=0, step=1, limit=4
    $region2: #{tpu_custom_call.1} parent=1 // loop_pre_header
      _
    $region3: #{tpu_custom_call.1} parent=1 // loop_header
      %s17 = sphi 0, %s21
      %p18 = scmp.ge.s32.totalorder %s17, 4
      %s27 = sphi 0, %s29
      %s30 = sphi 0, %s27
      %s31 = sphi 0, %s30
      %s47 = sphi 0, %s31
      %s51 = sphi 0, %s51
      %s53 = sphi 0, %s51
      %s54 = sphi 0, %s53
      %s68 = sphi 0, %s54
      %s72 = sphi 0, %s72
      %s74 = sphi 0, %s72
      %s75 = sphi 0, %s74
      %s89 = sphi 0, %s75
      %s93 = sphi 0, %s93
      %s95 = sphi 0, %s93
      %s96 = sphi 0, %s95
      %s110 = sphi 0, %s96
      %s114 = sphi 0, %s114
      %s116 = sphi 0, %s114
      %s117 = sphi 0, %s116
      %s131 = sphi 0, %s117
      %s135 = sphi 0, %s135
      %s137 = sphi 0, %s135
      %s138 = sphi 0, %s137
      %s152 = sphi 0, %s138
      %s156 = sphi 0, %s156
      %s158 = sphi 0, %s156
      %s159 = sphi 0, %s158
      %s173 = sphi 0, %s159
      %s179 = sphi 0, %s181
      %s182 = sphi 0, %s179
      %s183 = sphi 0, %s182
      %s199 = sphi 0, %s183
    $region4: #{tpu_custom_call.1} parent=1 // loop_header_branch
      %20 = sbr.rel (%p18) target = $region8
    $region5: #{tpu_custom_call.1} parent=1 // loop_body
      %s22 = ssub.s32 %s17, 1
      %s23 = ssub.s32 %s17, 2
      %s24 = sadd.s32 %s17, 1
      %s25 = ssub.s32 %s17, %s24
      %p26 = scmp.eq.s32.totalorder %s25, 0
      %s28 = sadd.s32 %s27, 1
      %s29 = scalar_select %p26, %s27, %s28
      %p32 = pneg %p26
      %p33 = scmp.eq.s32.totalorder %s17, 1
      %p34 = por %p32, %p33
      %p35 = scmp.ne.s32.totalorder %s27, %s30
      %p36 = scmp.eq.s32.totalorder %s17, 0
      %p37 = por %p35, %p36
      %p38 = scmp.ne.s32.totalorder %s27, %s30
      %p39 = scmp.eq.s32.totalorder %s22, 1
      %p40 = por %p38, %p39
      %p41 = scmp.ne.s32.totalorder %s30, %s31
      %p42 = scmp.eq.s32.totalorder %s22, 0
      %p43 = por %p41, %p42
      %p44 = scmp.ne.s32.totalorder %s30, %s31
      %p45 = scmp.eq.s32.totalorder %s23, 1
      %p46 = por %p44, %p45
      %p48 = scmp.ne.s32.totalorder %s31, %s47
      %p49 = scmp.eq.s32.totalorder %s23, 0
      %p50 = por %p48, %p49
      %s52 = sadd.s32 %s51, 1
      %p55 = scmp.eq.s32.totalorder %s17, 1
      %p56 = scmp.ne.s32.totalorder %s51, %s53
      %p57 = scmp.eq.s32.totalorder %s17, 0
      %p58 = por %p56, %p57
      %p59 = scmp.ne.s32.totalorder %s51, %s53
      %p60 = scmp.eq.s32.totalorder %s22, 1
      %p61 = por %p59, %p60
      %p62 = scmp.ne.s32.totalorder %s53, %s54
      %p63 = scmp.eq.s32.totalorder %s22, 0
      %p64 = por %p62, %p63
      %p65 = scmp.ne.s32.totalorder %s53, %s54
      %p66 = scmp.eq.s32.totalorder %s23, 1
      %p67 = por %p65, %p66
      %p69 = scmp.ne.s32.totalorder %s54, %s68
      %p70 = scmp.eq.s32.totalorder %s23, 0
      %p71 = por %p69, %p70
      %s73 = sadd.s32 %s72, 1
      %p76 = scmp.eq.s32.totalorder %s17, 1
      %p77 = scmp.ne.s32.totalorder %s72, %s74
      %p78 = scmp.eq.s32.totalorder %s17, 0
      %p79 = por %p77, %p78
      %p80 = scmp.ne.s32.totalorder %s72, %s74
      %p81 = scmp.eq.s32.totalorder %s22, 1
      %p82 = por %p80, %p81
      %p83 = scmp.ne.s32.totalorder %s74, %s75
      %p84 = scmp.eq.s32.totalorder %s22, 0
      %p85 = por %p83, %p84
      %p86 = scmp.ne.s32.totalorder %s74, %s75
      %p87 = scmp.eq.s32.totalorder %s23, 1
      %p88 = por %p86, %p87
      %p90 = scmp.ne.s32.totalorder %s75, %s89
      %p91 = scmp.eq.s32.totalorder %s23, 0
      %p92 = por %p90, %p91
      %s94 = sadd.s32 %s93, 1
      %p97 = scmp.eq.s32.totalorder %s17, 1
      %p98 = scmp.ne.s32.totalorder %s93, %s95
      %p99 = scmp.eq.s32.totalorder %s17, 0
      %p100 = por %p98, %p99
      %p101 = scmp.ne.s32.totalorder %s93, %s95
      %p102 = scmp.eq.s32.totalorder %s22, 1
      %p103 = por %p101, %p102
      %p104 = scmp.ne.s32.totalorder %s95, %s96
      %p105 = scmp.eq.s32.totalorder %s22, 0
      %p106 = por %p104, %p105
      %p107 = scmp.ne.s32.totalorder %s95, %s96
      %p108 = scmp.eq.s32.totalorder %s23, 1
      %p109 = por %p107, %p108
      %p111 = scmp.ne.s32.totalorder %s96, %s110
      %p112 = scmp.eq.s32.totalorder %s23, 0
      %p113 = por %p111, %p112
      %s115 = sadd.s32 %s114, 1
      %p118 = scmp.eq.s32.totalorder %s17, 1
      %p119 = scmp.ne.s32.totalorder %s114, %s116
      %p120 = scmp.eq.s32.totalorder %s17, 0
      %p121 = por %p119, %p120
      %p122 = scmp.ne.s32.totalorder %s114, %s116
      %p123 = scmp.eq.s32.totalorder %s22, 1
      %p124 = por %p122, %p123
      %p125 = scmp.ne.s32.totalorder %s116, %s117
      %p126 = scmp.eq.s32.totalorder %s22, 0
      %p127 = por %p125, %p126
      %p128 = scmp.ne.s32.totalorder %s116, %s117
      %p129 = scmp.eq.s32.totalorder %s23, 1
      %p130 = por %p128, %p129
      %p132 = scmp.ne.s32.totalorder %s117, %s131
      %p133 = scmp.eq.s32.totalorder %s23, 0
      %p134 = por %p132, %p133
      %s136 = sadd.s32 %s135, 1
      %p139 = scmp.eq.s32.totalorder %s17, 1
      %p140 = scmp.ne.s32.totalorder %s135, %s137
      %p141 = scmp.eq.s32.totalorder %s17, 0
      %p142 = por %p140, %p141
      %p143 = scmp.ne.s32.totalorder %s135, %s137
      %p144 = scmp.eq.s32.totalorder %s22, 1
      %p145 = por %p143, %p144
      %p146 = scmp.ne.s32.totalorder %s137, %s138
      %p147 = scmp.eq.s32.totalorder %s22, 0
      %p148 = por %p146, %p147
      %p149 = scmp.ne.s32.totalorder %s137, %s138
      %p150 = scmp.eq.s32.totalorder %s23, 1
      %p151 = por %p149, %p150
      %p153 = scmp.ne.s32.totalorder %s138, %s152
      %p154 = scmp.eq.s32.totalorder %s23, 0
      %p155 = por %p153, %p154
      %s157 = sadd.s32 %s156, 1
      %p160 = scmp.eq.s32.totalorder %s17, 1
      %p161 = scmp.ne.s32.totalorder %s156, %s158
      %p162 = scmp.eq.s32.totalorder %s17, 0
      %p163 = por %p161, %p162
      %p164 = scmp.ne.s32.totalorder %s156, %s158
      %p165 = scmp.eq.s32.totalorder %s22, 1
      %p166 = por %p164, %p165
      %p167 = scmp.ne.s32.totalorder %s158, %s159
      %p168 = scmp.eq.s32.totalorder %s22, 0
      %p169 = por %p167, %p168
      %p170 = scmp.ne.s32.totalorder %s158, %s159
      %p171 = scmp.eq.s32.totalorder %s23, 1
      %p172 = por %p170, %p171
      %p174 = scmp.ne.s32.totalorder %s159, %s173
      %p175 = scmp.eq.s32.totalorder %s23, 0
      %p176 = por %p174, %p175
      %s177 = ssub.s32 %s17, %s24
      %p178 = scmp.eq.s32.totalorder %s177, 0
      %s180 = sadd.s32 %s179, 1
      %s181 = scalar_select %p178, %s179, %s180
      %p184 = pneg %p178
      %p185 = scmp.eq.s32.totalorder %s17, 1
      %p186 = por %p184, %p185
      %p187 = scmp.ne.s32.totalorder %s179, %s182
      %p188 = scmp.eq.s32.totalorder %s17, 0
      %p189 = por %p187, %p188
      %p190 = scmp.ne.s32.totalorder %s179, %s182
      %p191 = scmp.eq.s32.totalorder %s22, 1
      %p192 = por %p190, %p191
      %p193 = scmp.ne.s32.totalorder %s182, %s183
      %p194 = scmp.eq.s32.totalorder %s22, 0
      %p195 = por %p193, %p194
      %p196 = scmp.ne.s32.totalorder %s182, %s183
      %p197 = scmp.eq.s32.totalorder %s23, 1
      %p198 = por %p196, %p197
      %p200 = scmp.ne.s32.totalorder %s183, %s199
      %p201 = scmp.eq.s32.totalorder %s23, 0
      %p202 = por %p200, %p201
      %p203 = scmp.le.s32.totalorder 1, %s17
      %p204 = scmp.lt.s32.totalorder %s17, 3
      %p205 = pnand %p203, %p204
      %p206 = pneg %p205
      // Predicated region
      $region9: #{tpu_custom_call.1} parent=5 // pred_check
        _
      $region10: #{tpu_custom_call.1} parent=5 // pred_check_branch
        %208 = sbr.rel (%p205) target = $region12
      $region11: #{tpu_custom_call.1} parent=5 // pred_region
        %s209 = ssub.s32 %s17, 1
        // Predicated region
        $region13: #{tpu_custom_call.1} parent=11 // pred_check
          %p210 = pneg %p64
        $region14: #{tpu_custom_call.1} parent=11 // pred_check_branch
          %212 = sbr.rel (%p210) target = $region16
        $region15: #{tpu_custom_call.1} parent=11 // pred_region
          _
        $region16: #{tpu_custom_call.1} parent=11 // pred_fallthru
          _
        // Predicated region
        $region17: #{tpu_custom_call.1} parent=11 // pred_check
          %p213 = pneg %p85
        $region18: #{tpu_custom_call.1} parent=11 // pred_check_branch
          %215 = sbr.rel (%p213) target = $region20
        $region19: #{tpu_custom_call.1} parent=11 // pred_region
          _
        $region20: #{tpu_custom_call.1} parent=11 // pred_fallthru
          _
        // Predicated region
        $region21: #{tpu_custom_call.1} parent=11 // pred_check
          %p216 = pneg %p106
        $region22: #{tpu_custom_call.1} parent=11 // pred_check_branch
          %218 = sbr.rel (%p216) target = $region24
        $region23: #{tpu_custom_call.1} parent=11 // pred_region
          _
        $region24: #{tpu_custom_call.1} parent=11 // pred_fallthru
          _
        // Predicated region
        $region25: #{tpu_custom_call.1} parent=11 // pred_check
          %p219 = pneg %p127
        $region26: #{tpu_custom_call.1} parent=11 // pred_check_branch
          %221 = sbr.rel (%p219) target = $region28
        $region27: #{tpu_custom_call.1} parent=11 // pred_region
          _
        $region28: #{tpu_custom_call.1} parent=11 // pred_fallthru
          _
        // Predicated region
        $region29: #{tpu_custom_call.1} parent=11 // pred_check
          %p222 = pneg %p148
        $region30: #{tpu_custom_call.1} parent=11 // pred_check_branch
          %224 = sbr.rel (%p222) target = $region32
        $region31: #{tpu_custom_call.1} parent=11 // pred_region
          _
        $region32: #{tpu_custom_call.1} parent=11 // pred_fallthru
          _
        // Predicated region
        $region33: #{tpu_custom_call.1} parent=11 // pred_check
          %p225 = pneg %p169
        $region34: #{tpu_custom_call.1} parent=11 // pred_check_branch
          %227 = sbr.rel (%p225) target = $region36
        $region35: #{tpu_custom_call.1} parent=11 // pred_region
          _
        $region36: #{tpu_custom_call.1} parent=11 // pred_fallthru
          _
      $region12: #{tpu_custom_call.1} parent=5 // pred_fallthru
        _
      %p228 = scmp.lt.s32.totalorder %s17, 2
      // Predicated region
      $region37: #{tpu_custom_call.1} parent=5 // pred_check
        %p229 = pneg %p228
      $region38: #{tpu_custom_call.1} parent=5 // pred_check_branch
        %231 = sbr.rel (%p229) target = $region40
      $region39: #{tpu_custom_call.1} parent=5 // pred_region
        // Predicated region
        $region41: #{tpu_custom_call.1} parent=39 // pred_check
          %p232 = pneg %p37
        $region42: #{tpu_custom_call.1} parent=39 // pred_check_branch
          %234 = sbr.rel (%p232) target = $region44
        $region43: #{tpu_custom_call.1} parent=39 // pred_region
          %s235 = smul.u32 8, %s17
          %p236 = scmp.lt.s32.totalorder %s235, 15
          %s237 = scalar_select %p236, %s235, 15
          %s238 = scalar_lea.vmem %s0, %s237
          %s239 = smul.u32 8, %s17
        $region44: #{tpu_custom_call.1} parent=39 // pred_fallthru
          _
      $region40: #{tpu_custom_call.1} parent=5 // pred_fallthru
        _
      %p240 = scmp.le.s32.totalorder 1, %s17
      %p241 = scmp.lt.s32.totalorder %s17, 3
      %p242 = pnand %p240, %p241
      %p243 = pneg %p242
      // Predicated region
      $region45: #{tpu_custom_call.1} parent=5 // pred_check
        _
      $region46: #{tpu_custom_call.1} parent=5 // pred_check_branch
        %245 = sbr.rel (%p242) target = $region48
      $region47: #{tpu_custom_call.1} parent=5 // pred_region
        %s246 = ssub.s32 %s17, 1
        %s247 = smul.u32 8, %s22
        %p248 = scmp.lt.s32.totalorder %s247, 15
        %s249 = scalar_select %p248, %s247, 15
        %s250 = scalar_lea.vmem %s0, %s249
        %p251 = pneg %p43
        %p252 = pneg %p40
        %p253 = pneg %p64
        %p254 = pneg %p61
        %p255 = pneg %p85
        %p256 = pneg %p82
        %p257 = pneg %p106
        %p258 = pneg %p103
        %p259 = pneg %p127
        %p260 = pneg %p124
        %p261 = pneg %p148
        %p262 = pneg %p145
        %p263 = pneg %p169
        %p264 = pneg %p166
        %p265 = pneg %p195
        %p266 = pneg %p192
        %s267 = sand.u32 %s182, 1
        %s268 = scalar_lea.sflag [#allocation4], %s267
        %s269 = sand.u32 %s182, 1
        %s270 = smul.addr %s269, 8
        %s271 = scalar_lea.vmem [#allocation3], %s270
        %s272 = smul.u32 8, %s22
        %p273 = scmp.lt.s32.totalorder %s272, 15
        %s274 = scalar_select %p273, %s272, 15
        %s275 = scalar_lea.vmem %s0, %s274
        %s276 = smul.u32 8, %s22
        %s277 = smul.u32 8, %s22
        %v278 = vld [vmem:[%s275] sm:$0xff]
        %v279 = vld [vmem:[%s1] sm:$0xff]
        %v280 = vld [vmem:[%s1 + $0x8] sm:$0xff]
        %v281 = vld [vmem:[%s1 + $0x10] sm:$0xff]
        %v282 = vld [vmem:[%s1 + $0x18] sm:$0xff]
        %v283 = vld [vmem:[%s1 + $0x20] sm:$0xff]
        %v284 = vld [vmem:[%s1 + $0x28] sm:$0xff]
        %v285 = vld [vmem:[%s1 + $0x30] sm:$0xff]
        %v286 = vld [vmem:[%s1 + $0x38] sm:$0xff]
        %v287 = vld [vmem:[%s1 + $0x40] sm:$0xff]
        %v288 = vld [vmem:[%s1 + $0x48] sm:$0xff]
        %v289 = vld [vmem:[%s1 + $0x50] sm:$0xff]
        %v290 = vld [vmem:[%s1 + $0x58] sm:$0xff]
        %v291 = vld [vmem:[%s1 + $0x60] sm:$0xff]
        %v292 = vld [vmem:[%s1 + $0x68] sm:$0xff]
        %v293 = vld [vmem:[%s1 + $0x70] sm:$0xff]
        %v294 = vld [vmem:[%s1 + $0x78] sm:$0xff]
        %296 = vset.pattern.permute.xlu0 0
        %297 = vperm.xlu0 %296, %v279
        %v298 = vpop.permute.xlu0 %297
        %301 = vset.pattern.permute.xlu0 0
        %302 = vperm.xlu0 %301, %v280
        %v303 = vpop.permute.xlu0 %302
        %306 = vset.pattern.permute.xlu0 0
        %307 = vperm.xlu0 %306, %v281
        %v308 = vpop.permute.xlu0 %307
        %311 = vset.pattern.permute.xlu0 0
        %312 = vperm.xlu0 %311, %v282
        %v313 = vpop.permute.xlu0 %312
        %316 = vset.pattern.permute.xlu0 0
        %317 = vperm.xlu0 %316, %v283
        %v318 = vpop.permute.xlu0 %317
        %321 = vset.pattern.permute.xlu0 0
        %322 = vperm.xlu0 %321, %v284
        %v323 = vpop.permute.xlu0 %322
        %326 = vset.pattern.permute.xlu0 0
        %327 = vperm.xlu0 %326, %v285
        %v328 = vpop.permute.xlu0 %327
        %331 = vset.pattern.permute.xlu0 0
        %332 = vperm.xlu0 %331, %v286
        %v333 = vpop.permute.xlu0 %332
        %336 = vset.pattern.permute.xlu0 0
        %337 = vperm.xlu0 %336, %v287
        %v338 = vpop.permute.xlu0 %337
        %341 = vset.pattern.permute.xlu0 0
        %342 = vperm.xlu0 %341, %v288
        %v343 = vpop.permute.xlu0 %342
        %346 = vset.pattern.permute.xlu0 0
        %347 = vperm.xlu0 %346, %v289
        %v348 = vpop.permute.xlu0 %347
        %351 = vset.pattern.permute.xlu0 0
        %352 = vperm.xlu0 %351, %v290
        %v353 = vpop.permute.xlu0 %352
        %356 = vset.pattern.permute.xlu0 0
        %357 = vperm.xlu0 %356, %v291
        %v358 = vpop.permute.xlu0 %357
        %361 = vset.pattern.permute.xlu0 0
        %362 = vperm.xlu0 %361, %v292
        %v363 = vpop.permute.xlu0 %362
        %366 = vset.pattern.permute.xlu0 0
        %367 = vperm.xlu0 %366, %v293
        %v368 = vpop.permute.xlu0 %367
        %371 = vset.pattern.permute.xlu0 0
        %372 = vperm.xlu0 %371, %v294
        %v373 = vpop.permute.xlu0 %372
        %v376 = vperm.slane %v278, 0
        %v377 = vperm.slane %v278, 1
        %v378 = vperm.slane %v278, 2
        %v379 = vperm.slane %v278, 3
        %v380 = vperm.slane %v278, 4
        %v381 = vperm.slane %v278, 5
        %v382 = vperm.slane %v278, 6
        %v383 = vperm.slane %v278, 7
        %v392 = vmul.f32 %v298, %v376
        %v393 = vmul.f32 %v298, %v377
        %v394 = vmul.f32 %v298, %v378
        %v395 = vmul.f32 %v298, %v379
        %v396 = vmul.f32 %v298, %v380
        %v397 = vmul.f32 %v298, %v381
        %v398 = vmul.f32 %v298, %v382
        %v399 = vmul.f32 %v298, %v383
        %v400 = vmul.f32 %v303, %v376
        %v401 = vmul.f32 %v303, %v377
        %v402 = vmul.f32 %v303, %v378
        %v403 = vmul.f32 %v303, %v379
        %v404 = vmul.f32 %v303, %v380
        %v405 = vmul.f32 %v303, %v381
        %v406 = vmul.f32 %v303, %v382
        %v407 = vmul.f32 %v303, %v383
        %v408 = vmul.f32 %v308, %v376
        %v409 = vmul.f32 %v308, %v377
        %v410 = vmul.f32 %v308, %v378
        %v411 = vmul.f32 %v308, %v379
        %v412 = vmul.f32 %v308, %v380
        %v413 = vmul.f32 %v308, %v381
        %v414 = vmul.f32 %v308, %v382
        %v415 = vmul.f32 %v308, %v383
        %v416 = vmul.f32 %v313, %v376
        %v417 = vmul.f32 %v313, %v377
        %v418 = vmul.f32 %v313, %v378
        %v419 = vmul.f32 %v313, %v379
        %v420 = vmul.f32 %v313, %v380
        %v421 = vmul.f32 %v313, %v381
        %v422 = vmul.f32 %v313, %v382
        %v423 = vmul.f32 %v313, %v383
        %v424 = vmul.f32 %v318, %v376
        %v425 = vmul.f32 %v318, %v377
        %v426 = vmul.f32 %v318, %v378
        %v427 = vmul.f32 %v318, %v379
        %v428 = vmul.f32 %v318, %v380
        %v429 = vmul.f32 %v318, %v381
        %v430 = vmul.f32 %v318, %v382
        %v431 = vmul.f32 %v318, %v383
        %v432 = vmul.f32 %v323, %v376
        %v433 = vmul.f32 %v323, %v377
        %v434 = vmul.f32 %v323, %v378
        %v435 = vmul.f32 %v323, %v379
        %v436 = vmul.f32 %v323, %v380
        %v437 = vmul.f32 %v323, %v381
        %v438 = vmul.f32 %v323, %v382
        %v439 = vmul.f32 %v323, %v383
        %v440 = vmul.f32 %v328, %v376
        %v441 = vmul.f32 %v328, %v377
        %v442 = vmul.f32 %v328, %v378
        %v443 = vmul.f32 %v328, %v379
        %v444 = vmul.f32 %v328, %v380
        %v445 = vmul.f32 %v328, %v381
        %v446 = vmul.f32 %v328, %v382
        %v447 = vmul.f32 %v328, %v383
        %v448 = vmul.f32 %v333, %v376
        %v449 = vmul.f32 %v333, %v377
        %v450 = vmul.f32 %v333, %v378
        %v451 = vmul.f32 %v333, %v379
        %v452 = vmul.f32 %v333, %v380
        %v453 = vmul.f32 %v333, %v381
        %v454 = vmul.f32 %v333, %v382
        %v455 = vmul.f32 %v333, %v383
        %v456 = vmul.f32 %v338, %v376
        %v457 = vmul.f32 %v338, %v377
        %v458 = vmul.f32 %v338, %v378
        %v459 = vmul.f32 %v338, %v379
        %v460 = vmul.f32 %v338, %v380
        %v461 = vmul.f32 %v338, %v381
        %v462 = vmul.f32 %v338, %v382
        %v463 = vmul.f32 %v338, %v383
        %v464 = vmul.f32 %v343, %v376
        %v465 = vmul.f32 %v343, %v377
        %v466 = vmul.f32 %v343, %v378
        %v467 = vmul.f32 %v343, %v379
        %v468 = vmul.f32 %v343, %v380
        %v469 = vmul.f32 %v343, %v381
        %v470 = vmul.f32 %v343, %v382
        %v471 = vmul.f32 %v343, %v383
        %v472 = vmul.f32 %v348, %v376
        %v473 = vmul.f32 %v348, %v377
        %v474 = vmul.f32 %v348, %v378
        %v475 = vmul.f32 %v348, %v379
        %v476 = vmul.f32 %v348, %v380
        %v477 = vmul.f32 %v348, %v381
        %v478 = vmul.f32 %v348, %v382
        %v479 = vmul.f32 %v348, %v383
        %v480 = vmul.f32 %v353, %v376
        %v481 = vmul.f32 %v353, %v377
        %v482 = vmul.f32 %v353, %v378
        %v483 = vmul.f32 %v353, %v379
        %v484 = vmul.f32 %v353, %v380
        %v485 = vmul.f32 %v353, %v381
        %v486 = vmul.f32 %v353, %v382
        %v487 = vmul.f32 %v353, %v383
        %v488 = vmul.f32 %v358, %v376
        %v489 = vmul.f32 %v358, %v377
        %v490 = vmul.f32 %v358, %v378
        %v491 = vmul.f32 %v358, %v379
        %v492 = vmul.f32 %v358, %v380
        %v493 = vmul.f32 %v358, %v381
        %v494 = vmul.f32 %v358, %v382
        %v495 = vmul.f32 %v358, %v383
        %v496 = vmul.f32 %v363, %v376
        %v497 = vmul.f32 %v363, %v377
        %v498 = vmul.f32 %v363, %v378
        %v499 = vmul.f32 %v363, %v379
        %v500 = vmul.f32 %v363, %v380
        %v501 = vmul.f32 %v363, %v381
        %v502 = vmul.f32 %v363, %v382
        %v503 = vmul.f32 %v363, %v383
        %v504 = vmul.f32 %v368, %v376
        %v505 = vmul.f32 %v368, %v377
        %v506 = vmul.f32 %v368, %v378
        %v507 = vmul.f32 %v368, %v379
        %v508 = vmul.f32 %v368, %v380
        %v509 = vmul.f32 %v368, %v381
        %v510 = vmul.f32 %v368, %v382
        %v511 = vmul.f32 %v368, %v383
        %v512 = vmul.f32 %v373, %v376
        %v513 = vmul.f32 %v373, %v377
        %v514 = vmul.f32 %v373, %v378
        %v515 = vmul.f32 %v373, %v379
        %v516 = vmul.f32 %v373, %v380
        %v517 = vmul.f32 %v373, %v381
        %v518 = vmul.f32 %v373, %v382
        %v519 = vmul.f32 %v373, %v383
        %v520 = vld [vmem:[%s2] sm:$0xff]
        %v521 = vld [vmem:[%s2 + $0x8] sm:$0xff]
        %v522 = vld [vmem:[%s2 + $0x10] sm:$0xff]
        %v523 = vld [vmem:[%s2 + $0x18] sm:$0xff]
        %v524 = vld [vmem:[%s2 + $0x20] sm:$0xff]
        %v525 = vld [vmem:[%s2 + $0x28] sm:$0xff]
        %v526 = vld [vmem:[%s2 + $0x30] sm:$0xff]
        %v527 = vld [vmem:[%s2 + $0x38] sm:$0xff]
        %v528 = vld [vmem:[%s2 + $0x40] sm:$0xff]
        %v529 = vld [vmem:[%s2 + $0x48] sm:$0xff]
        %v530 = vld [vmem:[%s2 + $0x50] sm:$0xff]
        %v531 = vld [vmem:[%s2 + $0x58] sm:$0xff]
        %v532 = vld [vmem:[%s2 + $0x60] sm:$0xff]
        %v533 = vld [vmem:[%s2 + $0x68] sm:$0xff]
        %v534 = vld [vmem:[%s2 + $0x70] sm:$0xff]
        %v535 = vld [vmem:[%s2 + $0x78] sm:$0xff]
        %537 = vset.pattern.permute.xlu0 0
        %538 = vperm.xlu0 %537, %v520
        %v539 = vpop.permute.xlu0 %538
        %542 = vset.pattern.permute.xlu0 0
        %543 = vperm.xlu0 %542, %v521
        %v544 = vpop.permute.xlu0 %543
        %547 = vset.pattern.permute.xlu0 0
        %548 = vperm.xlu0 %547, %v522
        %v549 = vpop.permute.xlu0 %548
        %552 = vset.pattern.permute.xlu0 0
        %553 = vperm.xlu0 %552, %v523
        %v554 = vpop.permute.xlu0 %553
        %557 = vset.pattern.permute.xlu0 0
        %558 = vperm.xlu0 %557, %v524
        %v559 = vpop.permute.xlu0 %558
        %562 = vset.pattern.permute.xlu0 0
        %563 = vperm.xlu0 %562, %v525
        %v564 = vpop.permute.xlu0 %563
        %567 = vset.pattern.permute.xlu0 0
        %568 = vperm.xlu0 %567, %v526
        %v569 = vpop.permute.xlu0 %568
        %572 = vset.pattern.permute.xlu0 0
        %573 = vperm.xlu0 %572, %v527
        %v574 = vpop.permute.xlu0 %573
        %577 = vset.pattern.permute.xlu0 0
        %578 = vperm.xlu0 %577, %v528
        %v579 = vpop.permute.xlu0 %578
        %582 = vset.pattern.permute.xlu0 0
        %583 = vperm.xlu0 %582, %v529
        %v584 = vpop.permute.xlu0 %583
        %587 = vset.pattern.permute.xlu0 0
        %588 = vperm.xlu0 %587, %v530
        %v589 = vpop.permute.xlu0 %588
        %592 = vset.pattern.permute.xlu0 0
        %593 = vperm.xlu0 %592, %v531
        %v594 = vpop.permute.xlu0 %593
        %597 = vset.pattern.permute.xlu0 0
        %598 = vperm.xlu0 %597, %v532
        %v599 = vpop.permute.xlu0 %598
        %602 = vset.pattern.permute.xlu0 0
        %603 = vperm.xlu0 %602, %v533
        %v604 = vpop.permute.xlu0 %603
        %607 = vset.pattern.permute.xlu0 0
        %608 = vperm.xlu0 %607, %v534
        %v609 = vpop.permute.xlu0 %608
        %612 = vset.pattern.permute.xlu0 0
        %613 = vperm.xlu0 %612, %v535
        %v614 = vpop.permute.xlu0 %613
        %v616 = vadd.f32 %v392, %v539
        %v617 = vadd.f32 %v393, %v539
        %v618 = vadd.f32 %v394, %v539
        %v619 = vadd.f32 %v395, %v539
        %v620 = vadd.f32 %v396, %v539
        %v621 = vadd.f32 %v397, %v539
        %v622 = vadd.f32 %v398, %v539
        %v623 = vadd.f32 %v399, %v539
        %v624 = vadd.f32 %v400, %v544
        %v625 = vadd.f32 %v401, %v544
        %v626 = vadd.f32 %v402, %v544
        %v627 = vadd.f32 %v403, %v544
        %v628 = vadd.f32 %v404, %v544
        %v629 = vadd.f32 %v405, %v544
        %v630 = vadd.f32 %v406, %v544
        %v631 = vadd.f32 %v407, %v544
        %v632 = vadd.f32 %v408, %v549
        %v633 = vadd.f32 %v409, %v549
        %v634 = vadd.f32 %v410, %v549
        %v635 = vadd.f32 %v411, %v549
        %v636 = vadd.f32 %v412, %v549
        %v637 = vadd.f32 %v413, %v549
        %v638 = vadd.f32 %v414, %v549
        %v639 = vadd.f32 %v415, %v549
        %v640 = vadd.f32 %v416, %v554
        %v641 = vadd.f32 %v417, %v554
        %v642 = vadd.f32 %v418, %v554
        %v643 = vadd.f32 %v419, %v554
        %v644 = vadd.f32 %v420, %v554
        %v645 = vadd.f32 %v421, %v554
        %v646 = vadd.f32 %v422, %v554
        %v647 = vadd.f32 %v423, %v554
        %v648 = vadd.f32 %v424, %v559
        %v649 = vadd.f32 %v425, %v559
        %v650 = vadd.f32 %v426, %v559
        %v651 = vadd.f32 %v427, %v559
        %v652 = vadd.f32 %v428, %v559
        %v653 = vadd.f32 %v429, %v559
        %v654 = vadd.f32 %v430, %v559
        %v655 = vadd.f32 %v431, %v559
        %v656 = vadd.f32 %v432, %v564
        %v657 = vadd.f32 %v433, %v564
        %v658 = vadd.f32 %v434, %v564
        %v659 = vadd.f32 %v435, %v564
        %v660 = vadd.f32 %v436, %v564
        %v661 = vadd.f32 %v437, %v564
        %v662 = vadd.f32 %v438, %v564
        %v663 = vadd.f32 %v439, %v564
        %v664 = vadd.f32 %v440, %v569
        %v665 = vadd.f32 %v441, %v569
        %v666 = vadd.f32 %v442, %v569
        %v667 = vadd.f32 %v443, %v569
        %v668 = vadd.f32 %v444, %v569
        %v669 = vadd.f32 %v445, %v569
        %v670 = vadd.f32 %v446, %v569
        %v671 = vadd.f32 %v447, %v569
        %v672 = vadd.f32 %v448, %v574
        %v673 = vadd.f32 %v449, %v574
        %v674 = vadd.f32 %v450, %v574
        %v675 = vadd.f32 %v451, %v574
        %v676 = vadd.f32 %v452, %v574
        %v677 = vadd.f32 %v453, %v574
        %v678 = vadd.f32 %v454, %v574
        %v679 = vadd.f32 %v455, %v574
        %v680 = vadd.f32 %v456, %v579
        %v681 = vadd.f32 %v457, %v579
        %v682 = vadd.f32 %v458, %v579
        %v683 = vadd.f32 %v459, %v579
        %v684 = vadd.f32 %v460, %v579
        %v685 = vadd.f32 %v461, %v579
        %v686 = vadd.f32 %v462, %v579
        %v687 = vadd.f32 %v463, %v579
        %v688 = vadd.f32 %v464, %v584
        %v689 = vadd.f32 %v465, %v584
        %v690 = vadd.f32 %v466, %v584
        %v691 = vadd.f32 %v467, %v584
        %v692 = vadd.f32 %v468, %v584
        %v693 = vadd.f32 %v469, %v584
        %v694 = vadd.f32 %v470, %v584
        %v695 = vadd.f32 %v471, %v584
        %v696 = vadd.f32 %v472, %v589
        %v697 = vadd.f32 %v473, %v589
        %v698 = vadd.f32 %v474, %v589
        %v699 = vadd.f32 %v475, %v589
        %v700 = vadd.f32 %v476, %v589
        %v701 = vadd.f32 %v477, %v589
        %v702 = vadd.f32 %v478, %v589
        %v703 = vadd.f32 %v479, %v589
        %v704 = vadd.f32 %v480, %v594
        %v705 = vadd.f32 %v481, %v594
        %v706 = vadd.f32 %v482, %v594
        %v707 = vadd.f32 %v483, %v594
        %v708 = vadd.f32 %v484, %v594
        %v709 = vadd.f32 %v485, %v594
        %v710 = vadd.f32 %v486, %v594
        %v711 = vadd.f32 %v487, %v594
        %v712 = vadd.f32 %v488, %v599
        %v713 = vadd.f32 %v489, %v599
        %v714 = vadd.f32 %v490, %v599
        %v715 = vadd.f32 %v491, %v599
        %v716 = vadd.f32 %v492, %v599
        %v717 = vadd.f32 %v493, %v599
        %v718 = vadd.f32 %v494, %v599
        %v719 = vadd.f32 %v495, %v599
        %v720 = vadd.f32 %v496, %v604
        %v721 = vadd.f32 %v497, %v604
        %v722 = vadd.f32 %v498, %v604
        %v723 = vadd.f32 %v499, %v604
        %v724 = vadd.f32 %v500, %v604
        %v725 = vadd.f32 %v501, %v604
        %v726 = vadd.f32 %v502, %v604
        %v727 = vadd.f32 %v503, %v604
        %v728 = vadd.f32 %v504, %v609
        %v729 = vadd.f32 %v505, %v609
        %v730 = vadd.f32 %v506, %v609
        %v731 = vadd.f32 %v507, %v609
        %v732 = vadd.f32 %v508, %v609
        %v733 = vadd.f32 %v509, %v609
        %v734 = vadd.f32 %v510, %v609
        %v735 = vadd.f32 %v511, %v609
        %v736 = vadd.f32 %v512, %v614
        %v737 = vadd.f32 %v513, %v614
        %v738 = vadd.f32 %v514, %v614
        %v739 = vadd.f32 %v515, %v614
        %v740 = vadd.f32 %v516, %v614
        %v741 = vadd.f32 %v517, %v614
        %v742 = vadd.f32 %v518, %v614
        %v743 = vadd.f32 %v519, %v614
        %v744 = vtanh.pop %v616
        %v745 = vtanh.pop %v617
        %v746 = vtanh.pop %v618
        %v747 = vtanh.pop %v619
        %v748 = vtanh.pop %v620
        %v749 = vtanh.pop %v621
        %v750 = vtanh.pop %v622
        %v751 = vtanh.pop %v623
        %v752 = vtanh.pop %v624
        %v753 = vtanh.pop %v625
        %v754 = vtanh.pop %v626
        %v755 = vtanh.pop %v627
        %v756 = vtanh.pop %v628
        %v757 = vtanh.pop %v629
        %v758 = vtanh.pop %v630
        %v759 = vtanh.pop %v631
        %v760 = vtanh.pop %v632
        %v761 = vtanh.pop %v633
        %v762 = vtanh.pop %v634
        %v763 = vtanh.pop %v635
        %v764 = vtanh.pop %v636
        %v765 = vtanh.pop %v637
        %v766 = vtanh.pop %v638
        %v767 = vtanh.pop %v639
        %v768 = vtanh.pop %v640
        %v769 = vtanh.pop %v641
        %v770 = vtanh.pop %v642
        %v771 = vtanh.pop %v643
        %v772 = vtanh.pop %v644
        %v773 = vtanh.pop %v645
        %v774 = vtanh.pop %v646
        %v775 = vtanh.pop %v647
        %v776 = vtanh.pop %v648
        %v777 = vtanh.pop %v649
        %v778 = vtanh.pop %v650
        %v779 = vtanh.pop %v651
        %v780 = vtanh.pop %v652
        %v781 = vtanh.pop %v653
        %v782 = vtanh.pop %v654
        %v783 = vtanh.pop %v655
        %v784 = vtanh.pop %v656
        %v785 = vtanh.pop %v657
        %v786 = vtanh.pop %v658
        %v787 = vtanh.pop %v659
        %v788 = vtanh.pop %v660
        %v789 = vtanh.pop %v661
        %v790 = vtanh.pop %v662
        %v791 = vtanh.pop %v663
        %v792 = vtanh.pop %v664
        %v793 = vtanh.pop %v665
        %v794 = vtanh.pop %v666
        %v795 = vtanh.pop %v667
        %v796 = vtanh.pop %v668
        %v797 = vtanh.pop %v669
        %v798 = vtanh.pop %v670
        %v799 = vtanh.pop %v671
        %v800 = vtanh.pop %v672
        %v801 = vtanh.pop %v673
        %v802 = vtanh.pop %v674
        %v803 = vtanh.pop %v675
        %v804 = vtanh.pop %v676
        %v805 = vtanh.pop %v677
        %v806 = vtanh.pop %v678
        %v807 = vtanh.pop %v679
        %v808 = vtanh.pop %v680
        %v809 = vtanh.pop %v681
        %v810 = vtanh.pop %v682
        %v811 = vtanh.pop %v683
        %v812 = vtanh.pop %v684
        %v813 = vtanh.pop %v685
        %v814 = vtanh.pop %v686
        %v815 = vtanh.pop %v687
        %v816 = vtanh.pop %v688
        %v817 = vtanh.pop %v689
        %v818 = vtanh.pop %v690
        %v819 = vtanh.pop %v691
        %v820 = vtanh.pop %v692
        %v821 = vtanh.pop %v693
        %v822 = vtanh.pop %v694
        %v823 = vtanh.pop %v695
        %v824 = vtanh.pop %v696
        %v825 = vtanh.pop %v697
        %v826 = vtanh.pop %v698
        %v827 = vtanh.pop %v699
        %v828 = vtanh.pop %v700
        %v829 = vtanh.pop %v701
        %v830 = vtanh.pop %v702
        %v831 = vtanh.pop %v703
        %v832 = vtanh.pop %v704
        %v833 = vtanh.pop %v705
        %v834 = vtanh.pop %v706
        %v835 = vtanh.pop %v707
        %v836 = vtanh.pop %v708
        %v837 = vtanh.pop %v709
        %v838 = vtanh.pop %v710
        %v839 = vtanh.pop %v711
        %v840 = vtanh.pop %v712
        %v841 = vtanh.pop %v713
        %v842 = vtanh.pop %v714
        %v843 = vtanh.pop %v715
        %v844 = vtanh.pop %v716
        %v845 = vtanh.pop %v717
        %v846 = vtanh.pop %v718
        %v847 = vtanh.pop %v719
        %v848 = vtanh.pop %v720
        %v849 = vtanh.pop %v721
        %v850 = vtanh.pop %v722
        %v851 = vtanh.pop %v723
        %v852 = vtanh.pop %v724
        %v853 = vtanh.pop %v725
        %v854 = vtanh.pop %v726
        %v855 = vtanh.pop %v727
        %v856 = vtanh.pop %v728
        %v857 = vtanh.pop %v729
        %v858 = vtanh.pop %v730
        %v859 = vtanh.pop %v731
        %v860 = vtanh.pop %v732
        %v861 = vtanh.pop %v733
        %v862 = vtanh.pop %v734
        %v863 = vtanh.pop %v735
        %v864 = vtanh.pop %v736
        %v865 = vtanh.pop %v737
        %v866 = vtanh.pop %v738
        %v867 = vtanh.pop %v739
        %v868 = vtanh.pop %v740
        %v869 = vtanh.pop %v741
        %v870 = vtanh.pop %v742
        %v871 = vtanh.pop %v743
        %v872 = vld [vmem:[%s3] sm:$0xff]
        %v873 = vld [vmem:[%s3 + $0x8] sm:$0xff]
        %v874 = vld [vmem:[%s3 + $0x10] sm:$0xff]
        %v875 = vld [vmem:[%s3 + $0x18] sm:$0xff]
        %v876 = vld [vmem:[%s3 + $0x20] sm:$0xff]
        %v877 = vld [vmem:[%s3 + $0x28] sm:$0xff]
        %v878 = vld [vmem:[%s3 + $0x30] sm:$0xff]
        %v879 = vld [vmem:[%s3 + $0x38] sm:$0xff]
        %v880 = vld [vmem:[%s3 + $0x40] sm:$0xff]
        %v881 = vld [vmem:[%s3 + $0x48] sm:$0xff]
        %v882 = vld [vmem:[%s3 + $0x50] sm:$0xff]
        %v883 = vld [vmem:[%s3 + $0x58] sm:$0xff]
        %v884 = vld [vmem:[%s3 + $0x60] sm:$0xff]
        %v885 = vld [vmem:[%s3 + $0x68] sm:$0xff]
        %v886 = vld [vmem:[%s3 + $0x70] sm:$0xff]
        %v887 = vld [vmem:[%s3 + $0x78] sm:$0xff]
        %v888 = vld [vmem:[%s4] sm:$0xff]
        %v889 = vld [vmem:[%s4 + $0x8] sm:$0xff]
        %v890 = vld [vmem:[%s4 + $0x10] sm:$0xff]
        %v891 = vld [vmem:[%s4 + $0x18] sm:$0xff]
        %v892 = vld [vmem:[%s4 + $0x20] sm:$0xff]
        %v893 = vld [vmem:[%s4 + $0x28] sm:$0xff]
        %v894 = vld [vmem:[%s4 + $0x30] sm:$0xff]
        %v895 = vld [vmem:[%s4 + $0x38] sm:$0xff]
        %v896 = vld [vmem:[%s4 + $0x40] sm:$0xff]
        %v897 = vld [vmem:[%s4 + $0x48] sm:$0xff]
        %v898 = vld [vmem:[%s4 + $0x50] sm:$0xff]
        %v899 = vld [vmem:[%s4 + $0x58] sm:$0xff]
        %v900 = vld [vmem:[%s4 + $0x60] sm:$0xff]
        %v901 = vld [vmem:[%s4 + $0x68] sm:$0xff]
        %v902 = vld [vmem:[%s4 + $0x70] sm:$0xff]
        %v903 = vld [vmem:[%s4 + $0x78] sm:$0xff]
        %905 = vset.pattern.permute.xlu0 0
        %906 = vperm.xlu0 %905, %v888
        %v907 = vpop.permute.xlu0 %906
        %910 = vset.pattern.permute.xlu0 0
        %911 = vperm.xlu0 %910, %v889
        %v912 = vpop.permute.xlu0 %911
        %915 = vset.pattern.permute.xlu0 0
        %916 = vperm.xlu0 %915, %v890
        %v917 = vpop.permute.xlu0 %916
        %920 = vset.pattern.permute.xlu0 0
        %921 = vperm.xlu0 %920, %v891
        %v922 = vpop.permute.xlu0 %921
        %925 = vset.pattern.permute.xlu0 0
        %926 = vperm.xlu0 %925, %v892
        %v927 = vpop.permute.xlu0 %926
        %930 = vset.pattern.permute.xlu0 0
        %931 = vperm.xlu0 %930, %v893
        %v932 = vpop.permute.xlu0 %931
        %935 = vset.pattern.permute.xlu0 0
        %936 = vperm.xlu0 %935, %v894
        %v937 = vpop.permute.xlu0 %936
        %940 = vset.pattern.permute.xlu0 0
        %941 = vperm.xlu0 %940, %v895
        %v942 = vpop.permute.xlu0 %941
        %945 = vset.pattern.permute.xlu0 0
        %946 = vperm.xlu0 %945, %v896
        %v947 = vpop.permute.xlu0 %946
        %950 = vset.pattern.permute.xlu0 0
        %951 = vperm.xlu0 %950, %v897
        %v952 = vpop.permute.xlu0 %951
        %955 = vset.pattern.permute.xlu0 0
        %956 = vperm.xlu0 %955, %v898
        %v957 = vpop.permute.xlu0 %956
        %960 = vset.pattern.permute.xlu0 0
        %961 = vperm.xlu0 %960, %v899
        %v962 = vpop.permute.xlu0 %961
        %965 = vset.pattern.permute.xlu0 0
        %966 = vperm.xlu0 %965, %v900
        %v967 = vpop.permute.xlu0 %966
        %970 = vset.pattern.permute.xlu0 0
        %971 = vperm.xlu0 %970, %v901
        %v972 = vpop.permute.xlu0 %971
        %975 = vset.pattern.permute.xlu0 0
        %976 = vperm.xlu0 %975, %v902
        %v977 = vpop.permute.xlu0 %976
        %980 = vset.pattern.permute.xlu0 0
        %981 = vperm.xlu0 %980, %v903
        %v982 = vpop.permute.xlu0 %981
        %984 = vmatpush.msra.mxu0 %v864
        %985 = vmatpush.msra.mxu0 %v856
        %986 = vmatpush.msra.mxu0 %v848
        %987 = vmatpush.msra.mxu0 %v840
        %988 = vmatpush.msra.mxu0 %v832
        %989 = vmatpush.msra.mxu0 %v824
        %990 = vmatpush.msra.mxu0 %v816
        %991 = vmatpush.msra.mxu0 %v808
        %992 = vmatpush.msra.mxu0 %v800
        %993 = vmatpush.msra.mxu0 %v792
        %994 = vmatpush.msra.mxu0 %v784
        %995 = vmatpush.msra.mxu0 %v776
        %996 = vmatpush.msra.mxu0 %v768
        %997 = vmatpush.msra.mxu0 %v760
        %998 = vmatpush.msra.mxu0 %v752
        %999 = vmatpush.msra.mxu0 %v744
        %1000 = vmatmul.f32.gmra.mxu0 %v872
        %v1001 = vpop.f32.mrf.mxu0
        %v1002 = vadd.f32 %v907, %v1001
        %1003 = vmatmul.f32.gmra.mxu0 %v873
        %v1004 = vpop.f32.mrf.mxu0
        %v1005 = vadd.f32 %v912, %v1004
        %1006 = vmatmul.f32.gmra.mxu0 %v874
        %v1007 = vpop.f32.mrf.mxu0
        %v1008 = vadd.f32 %v917, %v1007
        %1009 = vmatmul.f32.gmra.mxu0 %v875
        %v1010 = vpop.f32.mrf.mxu0
        %v1011 = vadd.f32 %v922, %v1010
        %1012 = vmatmul.f32.gmra.mxu0 %v876
        %v1013 = vpop.f32.mrf.mxu0
        %v1014 = vadd.f32 %v927, %v1013
        %1015 = vmatmul.f32.gmra.mxu0 %v877
        %v1016 = vpop.f32.mrf.mxu0
        %v1017 = vadd.f32 %v932, %v1016
        %1018 = vmatmul.f32.gmra.mxu0 %v878
        %v1019 = vpop.f32.mrf.mxu0
        %v1020 = vadd.f32 %v937, %v1019
        %1021 = vmatmul.f32.gmra.mxu0 %v879
        %v1022 = vpop.f32.mrf.mxu0
        %v1023 = vadd.f32 %v942, %v1022
        %1024 = vmatmul.f32.gmra.mxu0 %v880
        %v1025 = vpop.f32.mrf.mxu0
        %v1026 = vadd.f32 %v947, %v1025
        %1027 = vmatmul.f32.gmra.mxu0 %v881
        %v1028 = vpop.f32.mrf.mxu0
        %v1029 = vadd.f32 %v952, %v1028
        %1030 = vmatmul.f32.gmra.mxu0 %v882
        %v1031 = vpop.f32.mrf.mxu0
        %v1032 = vadd.f32 %v957, %v1031
        %1033 = vmatmul.f32.gmra.mxu0 %v883
        %v1034 = vpop.f32.mrf.mxu0
        %v1035 = vadd.f32 %v962, %v1034
        %1036 = vmatmul.f32.gmra.mxu0 %v884
        %v1037 = vpop.f32.mrf.mxu0
        %v1038 = vadd.f32 %v967, %v1037
        %1039 = vmatmul.f32.gmra.mxu0 %v885
        %v1040 = vpop.f32.mrf.mxu0
        %v1041 = vadd.f32 %v972, %v1040
        %1042 = vmatmul.f32.gmra.mxu0 %v886
        %v1043 = vpop.f32.mrf.mxu0
        %v1044 = vadd.f32 %v977, %v1043
        %1045 = vmatmul.f32.gmra.mxu0 %v887
        %v1046 = vpop.f32.mrf.mxu0
        %v1047 = vadd.f32 %v982, %v1046
        %1048 = vdwg.mxu0
        %1049 = vmatpush.msra.mxu0 %v865
        %1050 = vmatpush.msra.mxu0 %v857
        %1051 = vmatpush.msra.mxu0 %v849
        %1052 = vmatpush.msra.mxu0 %v841
        %1053 = vmatpush.msra.mxu0 %v833
        %1054 = vmatpush.msra.mxu0 %v825
        %1055 = vmatpush.msra.mxu0 %v817
        %1056 = vmatpush.msra.mxu0 %v809
        %1057 = vmatpush.msra.mxu0 %v801
        %1058 = vmatpush.msra.mxu0 %v793
        %1059 = vmatpush.msra.mxu0 %v785
        %1060 = vmatpush.msra.mxu0 %v777
        %1061 = vmatpush.msra.mxu0 %v769
        %1062 = vmatpush.msra.mxu0 %v761
        %1063 = vmatpush.msra.mxu0 %v753
        %1064 = vmatpush.msra.mxu0 %v745
        %1065 = vmatmul.f32.gmra.mxu0 %v872
        %v1066 = vpop.f32.mrf.mxu0
        %v1067 = vadd.f32 %v907, %v1066
        %1068 = vmatmul.f32.gmra.mxu0 %v873
        %v1069 = vpop.f32.mrf.mxu0
        %v1070 = vadd.f32 %v912, %v1069
        %1071 = vmatmul.f32.gmra.mxu0 %v874
        %v1072 = vpop.f32.mrf.mxu0
        %v1073 = vadd.f32 %v917, %v1072
        %1074 = vmatmul.f32.gmra.mxu0 %v875
        %v1075 = vpop.f32.mrf.mxu0
        %v1076 = vadd.f32 %v922, %v1075
        %1077 = vmatmul.f32.gmra.mxu0 %v876
        %v1078 = vpop.f32.mrf.mxu0
        %v1079 = vadd.f32 %v927, %v1078
        %1080 = vmatmul.f32.gmra.mxu0 %v877
        %v1081 = vpop.f32.mrf.mxu0
        %v1082 = vadd.f32 %v932, %v1081
        %1083 = vmatmul.f32.gmra.mxu0 %v878
        %v1084 = vpop.f32.mrf.mxu0
        %v1085 = vadd.f32 %v937, %v1084
        %1086 = vmatmul.f32.gmra.mxu0 %v879
        %v1087 = vpop.f32.mrf.mxu0
        %v1088 = vadd.f32 %v942, %v1087
        %1089 = vmatmul.f32.gmra.mxu0 %v880
        %v1090 = vpop.f32.mrf.mxu0
        %v1091 = vadd.f32 %v947, %v1090
        %1092 = vmatmul.f32.gmra.mxu0 %v881
        %v1093 = vpop.f32.mrf.mxu0
        %v1094 = vadd.f32 %v952, %v1093
        %1095 = vmatmul.f32.gmra.mxu0 %v882
        %v1096 = vpop.f32.mrf.mxu0
        %v1097 = vadd.f32 %v957, %v1096
        %1098 = vmatmul.f32.gmra.mxu0 %v883
        %v1099 = vpop.f32.mrf.mxu0
        %v1100 = vadd.f32 %v962, %v1099
        %1101 = vmatmul.f32.gmra.mxu0 %v884
        %v1102 = vpop.f32.mrf.mxu0
        %v1103 = vadd.f32 %v967, %v1102
        %1104 = vmatmul.f32.gmra.mxu0 %v885
        %v1105 = vpop.f32.mrf.mxu0
        %v1106 = vadd.f32 %v972, %v1105
        %1107 = vmatmul.f32.gmra.mxu0 %v886
        %v1108 = vpop.f32.mrf.mxu0
        %v1109 = vadd.f32 %v977, %v1108
        %1110 = vmatmul.f32.gmra.mxu0 %v887
        %v1111 = vpop.f32.mrf.mxu0
        %v1112 = vadd.f32 %v982, %v1111
        %1113 = vdwg.mxu0
        %1114 = vmatpush.msra.mxu0 %v866
        %1115 = vmatpush.msra.mxu0 %v858
        %1116 = vmatpush.msra.mxu0 %v850
        %1117 = vmatpush.msra.mxu0 %v842
        %1118 = vmatpush.msra.mxu0 %v834
        %1119 = vmatpush.msra.mxu0 %v826
        %1120 = vmatpush.msra.mxu0 %v818
        %1121 = vmatpush.msra.mxu0 %v810
        %1122 = vmatpush.msra.mxu0 %v802
        %1123 = vmatpush.msra.mxu0 %v794
        %1124 = vmatpush.msra.mxu0 %v786
        %1125 = vmatpush.msra.mxu0 %v778
        %1126 = vmatpush.msra.mxu0 %v770
        %1127 = vmatpush.msra.mxu0 %v762
        %1128 = vmatpush.msra.mxu0 %v754
        %1129 = vmatpush.msra.mxu0 %v746
        %1130 = vmatmul.f32.gmra.mxu0 %v872
        %v1131 = vpop.f32.mrf.mxu0
        %v1132 = vadd.f32 %v907, %v1131
        %1133 = vmatmul.f32.gmra.mxu0 %v873
        %v1134 = vpop.f32.mrf.mxu0
        %v1135 = vadd.f32 %v912, %v1134
        %1136 = vmatmul.f32.gmra.mxu0 %v874
        %v1137 = vpop.f32.mrf.mxu0
        %v1138 = vadd.f32 %v917, %v1137
        %1139 = vmatmul.f32.gmra.mxu0 %v875
        %v1140 = vpop.f32.mrf.mxu0
        %v1141 = vadd.f32 %v922, %v1140
        %1142 = vmatmul.f32.gmra.mxu0 %v876
        %v1143 = vpop.f32.mrf.mxu0
        %v1144 = vadd.f32 %v927, %v1143
        %1145 = vmatmul.f32.gmra.mxu0 %v877
        %v1146 = vpop.f32.mrf.mxu0
        %v1147 = vadd.f32 %v932, %v1146
        %1148 = vmatmul.f32.gmra.mxu0 %v878
        %v1149 = vpop.f32.mrf.mxu0
        %v1150 = vadd.f32 %v937, %v1149
        %1151 = vmatmul.f32.gmra.mxu0 %v879
        %v1152 = vpop.f32.mrf.mxu0
        %v1153 = vadd.f32 %v942, %v1152
        %1154 = vmatmul.f32.gmra.mxu0 %v880
        %v1155 = vpop.f32.mrf.mxu0
        %v1156 = vadd.f32 %v947, %v1155
        %1157 = vmatmul.f32.gmra.mxu0 %v881
        %v1158 = vpop.f32.mrf.mxu0
        %v1159 = vadd.f32 %v952, %v1158
        %1160 = vmatmul.f32.gmra.mxu0 %v882
        %v1161 = vpop.f32.mrf.mxu0
        %v1162 = vadd.f32 %v957, %v1161
        %1163 = vmatmul.f32.gmra.mxu0 %v883
        %v1164 = vpop.f32.mrf.mxu0
        %v1165 = vadd.f32 %v962, %v1164
        %1166 = vmatmul.f32.gmra.mxu0 %v884
        %v1167 = vpop.f32.mrf.mxu0
        %v1168 = vadd.f32 %v967, %v1167
        %1169 = vmatmul.f32.gmra.mxu0 %v885
        %v1170 = vpop.f32.mrf.mxu0
        %v1171 = vadd.f32 %v972, %v1170
        %1172 = vmatmul.f32.gmra.mxu0 %v886
        %v1173 = vpop.f32.mrf.mxu0
        %v1174 = vadd.f32 %v977, %v1173
        %1175 = vmatmul.f32.gmra.mxu0 %v887
        %v1176 = vpop.f32.mrf.mxu0
        %v1177 = vadd.f32 %v982, %v1176
        %1178 = vdwg.mxu0
        %1179 = vmatpush.msra.mxu0 %v867
        %1180 = vmatpush.msra.mxu0 %v859
        %1181 = vmatpush.msra.mxu0 %v851
        %1182 = vmatpush.msra.mxu0 %v843
        %1183 = vmatpush.msra.mxu0 %v835
        %1184 = vmatpush.msra.mxu0 %v827
        %1185 = vmatpush.msra.mxu0 %v819
        %1186 = vmatpush.msra.mxu0 %v811
        %1187 = vmatpush.msra.mxu0 %v803
        %1188 = vmatpush.msra.mxu0 %v795
        %1189 = vmatpush.msra.mxu0 %v787
        %1190 = vmatpush.msra.mxu0 %v779
        %1191 = vmatpush.msra.mxu0 %v771
        %1192 = vmatpush.msra.mxu0 %v763
        %1193 = vmatpush.msra.mxu0 %v755
        %1194 = vmatpush.msra.mxu0 %v747
        %1195 = vmatmul.f32.gmra.mxu0 %v872
        %v1196 = vpop.f32.mrf.mxu0
        %v1197 = vadd.f32 %v907, %v1196
        %1198 = vmatmul.f32.gmra.mxu0 %v873
        %v1199 = vpop.f32.mrf.mxu0
        %v1200 = vadd.f32 %v912, %v1199
        %1201 = vmatmul.f32.gmra.mxu0 %v874
        %v1202 = vpop.f32.mrf.mxu0
        %v1203 = vadd.f32 %v917, %v1202
        %1204 = vmatmul.f32.gmra.mxu0 %v875
        %v1205 = vpop.f32.mrf.mxu0
        %v1206 = vadd.f32 %v922, %v1205
        %1207 = vmatmul.f32.gmra.mxu0 %v876
        %v1208 = vpop.f32.mrf.mxu0
        %v1209 = vadd.f32 %v927, %v1208
        %1210 = vmatmul.f32.gmra.mxu0 %v877
        %v1211 = vpop.f32.mrf.mxu0
        %v1212 = vadd.f32 %v932, %v1211
        %1213 = vmatmul.f32.gmra.mxu0 %v878
        %v1214 = vpop.f32.mrf.mxu0
        %v1215 = vadd.f32 %v937, %v1214
        %1216 = vmatmul.f32.gmra.mxu0 %v879
        %v1217 = vpop.f32.mrf.mxu0
        %v1218 = vadd.f32 %v942, %v1217
        %1219 = vmatmul.f32.gmra.mxu0 %v880
        %v1220 = vpop.f32.mrf.mxu0
        %v1221 = vadd.f32 %v947, %v1220
        %1222 = vmatmul.f32.gmra.mxu0 %v881
        %v1223 = vpop.f32.mrf.mxu0
        %v1224 = vadd.f32 %v952, %v1223
        %1225 = vmatmul.f32.gmra.mxu0 %v882
        %v1226 = vpop.f32.mrf.mxu0
        %v1227 = vadd.f32 %v957, %v1226
        %1228 = vmatmul.f32.gmra.mxu0 %v883
        %v1229 = vpop.f32.mrf.mxu0
        %v1230 = vadd.f32 %v962, %v1229
        %1231 = vmatmul.f32.gmra.mxu0 %v884
        %v1232 = vpop.f32.mrf.mxu0
        %v1233 = vadd.f32 %v967, %v1232
        %1234 = vmatmul.f32.gmra.mxu0 %v885
        %v1235 = vpop.f32.mrf.mxu0
        %v1236 = vadd.f32 %v972, %v1235
        %1237 = vmatmul.f32.gmra.mxu0 %v886
        %v1238 = vpop.f32.mrf.mxu0
        %v1239 = vadd.f32 %v977, %v1238
        %1240 = vmatmul.f32.gmra.mxu0 %v887
        %v1241 = vpop.f32.mrf.mxu0
        %v1242 = vadd.f32 %v982, %v1241
        %1243 = vdwg.mxu0
        %1244 = vmatpush.msra.mxu0 %v868
        %1245 = vmatpush.msra.mxu0 %v860
        %1246 = vmatpush.msra.mxu0 %v852
        %1247 = vmatpush.msra.mxu0 %v844
        %1248 = vmatpush.msra.mxu0 %v836
        %1249 = vmatpush.msra.mxu0 %v828
        %1250 = vmatpush.msra.mxu0 %v820
        %1251 = vmatpush.msra.mxu0 %v812
        %1252 = vmatpush.msra.mxu0 %v804
        %1253 = vmatpush.msra.mxu0 %v796
        %1254 = vmatpush.msra.mxu0 %v788
        %1255 = vmatpush.msra.mxu0 %v780
        %1256 = vmatpush.msra.mxu0 %v772
        %1257 = vmatpush.msra.mxu0 %v764
        %1258 = vmatpush.msra.mxu0 %v756
        %1259 = vmatpush.msra.mxu0 %v748
        %1260 = vmatmul.f32.gmra.mxu0 %v872
        %v1261 = vpop.f32.mrf.mxu0
        %v1262 = vadd.f32 %v907, %v1261
        %1263 = vmatmul.f32.gmra.mxu0 %v873
        %v1264 = vpop.f32.mrf.mxu0
        %v1265 = vadd.f32 %v912, %v1264
        %1266 = vmatmul.f32.gmra.mxu0 %v874
        %v1267 = vpop.f32.mrf.mxu0
        %v1268 = vadd.f32 %v917, %v1267
        %1269 = vmatmul.f32.gmra.mxu0 %v875
        %v1270 = vpop.f32.mrf.mxu0
        %v1271 = vadd.f32 %v922, %v1270
        %1272 = vmatmul.f32.gmra.mxu0 %v876
        %v1273 = vpop.f32.mrf.mxu0
        %v1274 = vadd.f32 %v927, %v1273
        %1275 = vmatmul.f32.gmra.mxu0 %v877
        %v1276 = vpop.f32.mrf.mxu0
        %v1277 = vadd.f32 %v932, %v1276
        %1278 = vmatmul.f32.gmra.mxu0 %v878
        %v1279 = vpop.f32.mrf.mxu0
        %v1280 = vadd.f32 %v937, %v1279
        %1281 = vmatmul.f32.gmra.mxu0 %v879
        %v1282 = vpop.f32.mrf.mxu0
        %v1283 = vadd.f32 %v942, %v1282
        %1284 = vmatmul.f32.gmra.mxu0 %v880
        %v1285 = vpop.f32.mrf.mxu0
        %v1286 = vadd.f32 %v947, %v1285
        %1287 = vmatmul.f32.gmra.mxu0 %v881
        %v1288 = vpop.f32.mrf.mxu0
        %v1289 = vadd.f32 %v952, %v1288
        %1290 = vmatmul.f32.gmra.mxu0 %v882
        %v1291 = vpop.f32.mrf.mxu0
        %v1292 = vadd.f32 %v957, %v1291
        %1293 = vmatmul.f32.gmra.mxu0 %v883
        %v1294 = vpop.f32.mrf.mxu0
        %v1295 = vadd.f32 %v962, %v1294
        %1296 = vmatmul.f32.gmra.mxu0 %v884
        %v1297 = vpop.f32.mrf.mxu0
        %v1298 = vadd.f32 %v967, %v1297
        %1299 = vmatmul.f32.gmra.mxu0 %v885
        %v1300 = vpop.f32.mrf.mxu0
        %v1301 = vadd.f32 %v972, %v1300
        %1302 = vmatmul.f32.gmra.mxu0 %v886
        %v1303 = vpop.f32.mrf.mxu0
        %v1304 = vadd.f32 %v977, %v1303
        %1305 = vmatmul.f32.gmra.mxu0 %v887
        %v1306 = vpop.f32.mrf.mxu0
        %v1307 = vadd.f32 %v982, %v1306
        %1308 = vdwg.mxu0
        %1309 = vmatpush.msra.mxu0 %v869
        %1310 = vmatpush.msra.mxu0 %v861
        %1311 = vmatpush.msra.mxu0 %v853
        %1312 = vmatpush.msra.mxu0 %v845
        %1313 = vmatpush.msra.mxu0 %v837
        %1314 = vmatpush.msra.mxu0 %v829
        %1315 = vmatpush.msra.mxu0 %v821
        %1316 = vmatpush.msra.mxu0 %v813
        %1317 = vmatpush.msra.mxu0 %v805
        %1318 = vmatpush.msra.mxu0 %v797
        %1319 = vmatpush.msra.mxu0 %v789
        %1320 = vmatpush.msra.mxu0 %v781
        %1321 = vmatpush.msra.mxu0 %v773
        %1322 = vmatpush.msra.mxu0 %v765
        %1323 = vmatpush.msra.mxu0 %v757
        %1324 = vmatpush.msra.mxu0 %v749
        %1325 = vmatmul.f32.gmra.mxu0 %v872
        %v1326 = vpop.f32.mrf.mxu0
        %v1327 = vadd.f32 %v907, %v1326
        %1328 = vmatmul.f32.gmra.mxu0 %v873
        %v1329 = vpop.f32.mrf.mxu0
        %v1330 = vadd.f32 %v912, %v1329
        %1331 = vmatmul.f32.gmra.mxu0 %v874
        %v1332 = vpop.f32.mrf.mxu0
        %v1333 = vadd.f32 %v917, %v1332
        %1334 = vmatmul.f32.gmra.mxu0 %v875
        %v1335 = vpop.f32.mrf.mxu0
        %v1336 = vadd.f32 %v922, %v1335
        %1337 = vmatmul.f32.gmra.mxu0 %v876
        %v1338 = vpop.f32.mrf.mxu0
        %v1339 = vadd.f32 %v927, %v1338
        %1340 = vmatmul.f32.gmra.mxu0 %v877
        %v1341 = vpop.f32.mrf.mxu0
        %v1342 = vadd.f32 %v932, %v1341
        %1343 = vmatmul.f32.gmra.mxu0 %v878
        %v1344 = vpop.f32.mrf.mxu0
        %v1345 = vadd.f32 %v937, %v1344
        %1346 = vmatmul.f32.gmra.mxu0 %v879
        %v1347 = vpop.f32.mrf.mxu0
        %v1348 = vadd.f32 %v942, %v1347
        %1349 = vmatmul.f32.gmra.mxu0 %v880
        %v1350 = vpop.f32.mrf.mxu0
        %v1351 = vadd.f32 %v947, %v1350
        %1352 = vmatmul.f32.gmra.mxu0 %v881
        %v1353 = vpop.f32.mrf.mxu0
        %v1354 = vadd.f32 %v952, %v1353
        %1355 = vmatmul.f32.gmra.mxu0 %v882
        %v1356 = vpop.f32.mrf.mxu0
        %v1357 = vadd.f32 %v957, %v1356
        %1358 = vmatmul.f32.gmra.mxu0 %v883
        %v1359 = vpop.f32.mrf.mxu0
        %v1360 = vadd.f32 %v962, %v1359
        %1361 = vmatmul.f32.gmra.mxu0 %v884
        %v1362 = vpop.f32.mrf.mxu0
        %v1363 = vadd.f32 %v967, %v1362
        %1364 = vmatmul.f32.gmra.mxu0 %v885
        %v1365 = vpop.f32.mrf.mxu0
        %v1366 = vadd.f32 %v972, %v1365
        %1367 = vmatmul.f32.gmra.mxu0 %v886
        %v1368 = vpop.f32.mrf.mxu0
        %v1369 = vadd.f32 %v977, %v1368
        %1370 = vmatmul.f32.gmra.mxu0 %v887
        %v1371 = vpop.f32.mrf.mxu0
        %v1372 = vadd.f32 %v982, %v1371
        %1373 = vdwg.mxu0
        %1374 = vmatpush.msra.mxu0 %v870
        %1375 = vmatpush.msra.mxu0 %v862
        %1376 = vmatpush.msra.mxu0 %v854
        %1377 = vmatpush.msra.mxu0 %v846
        %1378 = vmatpush.msra.mxu0 %v838
        %1379 = vmatpush.msra.mxu0 %v830
        %1380 = vmatpush.msra.mxu0 %v822
        %1381 = vmatpush.msra.mxu0 %v814
        %1382 = vmatpush.msra.mxu0 %v806
        %1383 = vmatpush.msra.mxu0 %v798
        %1384 = vmatpush.msra.mxu0 %v790
        %1385 = vmatpush.msra.mxu0 %v782
        %1386 = vmatpush.msra.mxu0 %v774
        %1387 = vmatpush.msra.mxu0 %v766
        %1388 = vmatpush.msra.mxu0 %v758
        %1389 = vmatpush.msra.mxu0 %v750
        %1390 = vmatmul.f32.gmra.mxu0 %v872
        %v1391 = vpop.f32.mrf.mxu0
        %v1392 = vadd.f32 %v907, %v1391
        %1393 = vmatmul.f32.gmra.mxu0 %v873
        %v1394 = vpop.f32.mrf.mxu0
        %v1395 = vadd.f32 %v912, %v1394
        %1396 = vmatmul.f32.gmra.mxu0 %v874
        %v1397 = vpop.f32.mrf.mxu0
        %v1398 = vadd.f32 %v917, %v1397
        %1399 = vmatmul.f32.gmra.mxu0 %v875
        %v1400 = vpop.f32.mrf.mxu0
        %v1401 = vadd.f32 %v922, %v1400
        %1402 = vmatmul.f32.gmra.mxu0 %v876
        %v1403 = vpop.f32.mrf.mxu0
        %v1404 = vadd.f32 %v927, %v1403
        %1405 = vmatmul.f32.gmra.mxu0 %v877
        %v1406 = vpop.f32.mrf.mxu0
        %v1407 = vadd.f32 %v932, %v1406
        %1408 = vmatmul.f32.gmra.mxu0 %v878
        %v1409 = vpop.f32.mrf.mxu0
        %v1410 = vadd.f32 %v937, %v1409
        %1411 = vmatmul.f32.gmra.mxu0 %v879
        %v1412 = vpop.f32.mrf.mxu0
        %v1413 = vadd.f32 %v942, %v1412
        %1414 = vmatmul.f32.gmra.mxu0 %v880
        %v1415 = vpop.f32.mrf.mxu0
        %v1416 = vadd.f32 %v947, %v1415
        %1417 = vmatmul.f32.gmra.mxu0 %v881
        %v1418 = vpop.f32.mrf.mxu0
        %v1419 = vadd.f32 %v952, %v1418
        %1420 = vmatmul.f32.gmra.mxu0 %v882
        %v1421 = vpop.f32.mrf.mxu0
        %v1422 = vadd.f32 %v957, %v1421
        %1423 = vmatmul.f32.gmra.mxu0 %v883
        %v1424 = vpop.f32.mrf.mxu0
        %v1425 = vadd.f32 %v962, %v1424
        %1426 = vmatmul.f32.gmra.mxu0 %v884
        %v1427 = vpop.f32.mrf.mxu0
        %v1428 = vadd.f32 %v967, %v1427
        %1429 = vmatmul.f32.gmra.mxu0 %v885
        %v1430 = vpop.f32.mrf.mxu0
        %v1431 = vadd.f32 %v972, %v1430
        %1432 = vmatmul.f32.gmra.mxu0 %v886
        %v1433 = vpop.f32.mrf.mxu0
        %v1434 = vadd.f32 %v977, %v1433
        %1435 = vmatmul.f32.gmra.mxu0 %v887
        %v1436 = vpop.f32.mrf.mxu0
        %v1437 = vadd.f32 %v982, %v1436
        %1438 = vdwg.mxu0
        %1439 = vmatpush.msra.mxu0 %v871
        %1440 = vmatpush.msra.mxu0 %v863
        %1441 = vmatpush.msra.mxu0 %v855
        %1442 = vmatpush.msra.mxu0 %v847
        %1443 = vmatpush.msra.mxu0 %v839
        %1444 = vmatpush.msra.mxu0 %v831
        %1445 = vmatpush.msra.mxu0 %v823
        %1446 = vmatpush.msra.mxu0 %v815
        %1447 = vmatpush.msra.mxu0 %v807
        %1448 = vmatpush.msra.mxu0 %v799
        %1449 = vmatpush.msra.mxu0 %v791
        %1450 = vmatpush.msra.mxu0 %v783
        %1451 = vmatpush.msra.mxu0 %v775
        %1452 = vmatpush.msra.mxu0 %v767
        %1453 = vmatpush.msra.mxu0 %v759
        %1454 = vmatpush.msra.mxu0 %v751
        %1455 = vmatmul.f32.gmra.mxu0 %v872
        %v1456 = vpop.f32.mrf.mxu0
        %v1457 = vadd.f32 %v907, %v1456
        %1458 = vmatmul.f32.gmra.mxu0 %v873
        %v1459 = vpop.f32.mrf.mxu0
        %v1460 = vadd.f32 %v912, %v1459
        %1461 = vmatmul.f32.gmra.mxu0 %v874
        %v1462 = vpop.f32.mrf.mxu0
        %v1463 = vadd.f32 %v917, %v1462
        %1464 = vmatmul.f32.gmra.mxu0 %v875
        %v1465 = vpop.f32.mrf.mxu0
        %v1466 = vadd.f32 %v922, %v1465
        %1467 = vmatmul.f32.gmra.mxu0 %v876
        %v1468 = vpop.f32.mrf.mxu0
        %v1469 = vadd.f32 %v927, %v1468
        %1470 = vmatmul.f32.gmra.mxu0 %v877
        %v1471 = vpop.f32.mrf.mxu0
        %v1472 = vadd.f32 %v932, %v1471
        %1473 = vmatmul.f32.gmra.mxu0 %v878
        %v1474 = vpop.f32.mrf.mxu0
        %v1475 = vadd.f32 %v937, %v1474
        %1476 = vmatmul.f32.gmra.mxu0 %v879
        %v1477 = vpop.f32.mrf.mxu0
        %v1478 = vadd.f32 %v942, %v1477
        %1479 = vmatmul.f32.gmra.mxu0 %v880
        %v1480 = vpop.f32.mrf.mxu0
        %v1481 = vadd.f32 %v947, %v1480
        %1482 = vmatmul.f32.gmra.mxu0 %v881
        %v1483 = vpop.f32.mrf.mxu0
        %v1484 = vadd.f32 %v952, %v1483
        %1485 = vmatmul.f32.gmra.mxu0 %v882
        %v1486 = vpop.f32.mrf.mxu0
        %v1487 = vadd.f32 %v957, %v1486
        %1488 = vmatmul.f32.gmra.mxu0 %v883
        %v1489 = vpop.f32.mrf.mxu0
        %v1490 = vadd.f32 %v962, %v1489
        %1491 = vmatmul.f32.gmra.mxu0 %v884
        %v1492 = vpop.f32.mrf.mxu0
        %v1493 = vadd.f32 %v967, %v1492
        %1494 = vmatmul.f32.gmra.mxu0 %v885
        %v1495 = vpop.f32.mrf.mxu0
        %v1496 = vadd.f32 %v972, %v1495
        %1497 = vmatmul.f32.gmra.mxu0 %v886
        %v1498 = vpop.f32.mrf.mxu0
        %v1499 = vadd.f32 %v977, %v1498
        %1500 = vmatmul.f32.gmra.mxu0 %v887
        %v1501 = vpop.f32.mrf.mxu0
        %v1502 = vadd.f32 %v982, %v1501
        %1503 = vdwg.mxu0
        %v1504 = vtanh.pop %v1002
        %v1505 = vtanh.pop %v1067
        %v1506 = vtanh.pop %v1132
        %v1507 = vtanh.pop %v1197
        %v1508 = vtanh.pop %v1262
        %v1509 = vtanh.pop %v1327
        %v1510 = vtanh.pop %v1392
        %v1511 = vtanh.pop %v1457
        %v1512 = vtanh.pop %v1005
        %v1513 = vtanh.pop %v1070
        %v1514 = vtanh.pop %v1135
        %v1515 = vtanh.pop %v1200
        %v1516 = vtanh.pop %v1265
        %v1517 = vtanh.pop %v1330
        %v1518 = vtanh.pop %v1395
        %v1519 = vtanh.pop %v1460
        %v1520 = vtanh.pop %v1008
        %v1521 = vtanh.pop %v1073
        %v1522 = vtanh.pop %v1138
        %v1523 = vtanh.pop %v1203
        %v1524 = vtanh.pop %v1268
        %v1525 = vtanh.pop %v1333
        %v1526 = vtanh.pop %v1398
        %v1527 = vtanh.pop %v1463
        %v1528 = vtanh.pop %v1011
        %v1529 = vtanh.pop %v1076
        %v1530 = vtanh.pop %v1141
        %v1531 = vtanh.pop %v1206
        %v1532 = vtanh.pop %v1271
        %v1533 = vtanh.pop %v1336
        %v1534 = vtanh.pop %v1401
        %v1535 = vtanh.pop %v1466
        %v1536 = vtanh.pop %v1014
        %v1537 = vtanh.pop %v1079
        %v1538 = vtanh.pop %v1144
        %v1539 = vtanh.pop %v1209
        %v1540 = vtanh.pop %v1274
        %v1541 = vtanh.pop %v1339
        %v1542 = vtanh.pop %v1404
        %v1543 = vtanh.pop %v1469
        %v1544 = vtanh.pop %v1017
        %v1545 = vtanh.pop %v1082
        %v1546 = vtanh.pop %v1147
        %v1547 = vtanh.pop %v1212
        %v1548 = vtanh.pop %v1277
        %v1549 = vtanh.pop %v1342
        %v1550 = vtanh.pop %v1407
        %v1551 = vtanh.pop %v1472
        %v1552 = vtanh.pop %v1020
        %v1553 = vtanh.pop %v1085
        %v1554 = vtanh.pop %v1150
        %v1555 = vtanh.pop %v1215
        %v1556 = vtanh.pop %v1280
        %v1557 = vtanh.pop %v1345
        %v1558 = vtanh.pop %v1410
        %v1559 = vtanh.pop %v1475
        %v1560 = vtanh.pop %v1023
        %v1561 = vtanh.pop %v1088
        %v1562 = vtanh.pop %v1153
        %v1563 = vtanh.pop %v1218
        %v1564 = vtanh.pop %v1283
        %v1565 = vtanh.pop %v1348
        %v1566 = vtanh.pop %v1413
        %v1567 = vtanh.pop %v1478
        %v1568 = vtanh.pop %v1026
        %v1569 = vtanh.pop %v1091
        %v1570 = vtanh.pop %v1156
        %v1571 = vtanh.pop %v1221
        %v1572 = vtanh.pop %v1286
        %v1573 = vtanh.pop %v1351
        %v1574 = vtanh.pop %v1416
        %v1575 = vtanh.pop %v1481
        %v1576 = vtanh.pop %v1029
        %v1577 = vtanh.pop %v1094
        %v1578 = vtanh.pop %v1159
        %v1579 = vtanh.pop %v1224
        %v1580 = vtanh.pop %v1289
        %v1581 = vtanh.pop %v1354
        %v1582 = vtanh.pop %v1419
        %v1583 = vtanh.pop %v1484
        %v1584 = vtanh.pop %v1032
        %v1585 = vtanh.pop %v1097
        %v1586 = vtanh.pop %v1162
        %v1587 = vtanh.pop %v1227
        %v1588 = vtanh.pop %v1292
        %v1589 = vtanh.pop %v1357
        %v1590 = vtanh.pop %v1422
        %v1591 = vtanh.pop %v1487
        %v1592 = vtanh.pop %v1035
        %v1593 = vtanh.pop %v1100
        %v1594 = vtanh.pop %v1165
        %v1595 = vtanh.pop %v1230
        %v1596 = vtanh.pop %v1295
        %v1597 = vtanh.pop %v1360
        %v1598 = vtanh.pop %v1425
        %v1599 = vtanh.pop %v1490
        %v1600 = vtanh.pop %v1038
        %v1601 = vtanh.pop %v1103
        %v1602 = vtanh.pop %v1168
        %v1603 = vtanh.pop %v1233
        %v1604 = vtanh.pop %v1298
        %v1605 = vtanh.pop %v1363
        %v1606 = vtanh.pop %v1428
        %v1607 = vtanh.pop %v1493
        %v1608 = vtanh.pop %v1041
        %v1609 = vtanh.pop %v1106
        %v1610 = vtanh.pop %v1171
        %v1611 = vtanh.pop %v1236
        %v1612 = vtanh.pop %v1301
        %v1613 = vtanh.pop %v1366
        %v1614 = vtanh.pop %v1431
        %v1615 = vtanh.pop %v1496
        %v1616 = vtanh.pop %v1044
        %v1617 = vtanh.pop %v1109
        %v1618 = vtanh.pop %v1174
        %v1619 = vtanh.pop %v1239
        %v1620 = vtanh.pop %v1304
        %v1621 = vtanh.pop %v1369
        %v1622 = vtanh.pop %v1434
        %v1623 = vtanh.pop %v1499
        %v1624 = vtanh.pop %v1047
        %v1625 = vtanh.pop %v1112
        %v1626 = vtanh.pop %v1177
        %v1627 = vtanh.pop %v1242
        %v1628 = vtanh.pop %v1307
        %v1629 = vtanh.pop %v1372
        %v1630 = vtanh.pop %v1437
        %v1631 = vtanh.pop %v1502
        %v1632 = vld [vmem:[%s5] sm:$0x1]
        %s1633 = sld [smem:[#allocation2]]
        %v1634 = vstv %s1633
        %1635 = vmatpush.msra.mxu0 %v1624
        %1636 = vmatpush.msra.mxu0 %v1616
        %1637 = vmatpush.msra.mxu0 %v1608
        %1638 = vmatpush.msra.mxu0 %v1600
        %1639 = vmatpush.msra.mxu0 %v1592
        %1640 = vmatpush.msra.mxu0 %v1584
        %1641 = vmatpush.msra.mxu0 %v1576
        %1642 = vmatpush.msra.mxu0 %v1568
        %1643 = vmatpush.msra.mxu0 %v1560
        %1644 = vmatpush.msra.mxu0 %v1552
        %1645 = vmatpush.msra.mxu0 %v1544
        %1646 = vmatpush.msra.mxu0 %v1536
        %1647 = vmatpush.msra.mxu0 %v1528
        %1648 = vmatpush.msra.mxu0 %v1520
        %1649 = vmatpush.msra.mxu0 %v1512
        %1650 = vmatpush.msra.mxu0 %v1504
        %1651 = vmatmul.f32.gmra.mxu0 %v1632
        %v1652 = vpop.f32.mrf.mxu0
        %v1653 = vadd.f32 %v1634, %v1652
        %1654 = vdwg.mxu0
        %1655 = vmatpush.msra.mxu0 %v1625
        %1656 = vmatpush.msra.mxu0 %v1617
        %1657 = vmatpush.msra.mxu0 %v1609
        %1658 = vmatpush.msra.mxu0 %v1601
        %1659 = vmatpush.msra.mxu0 %v1593
        %1660 = vmatpush.msra.mxu0 %v1585
        %1661 = vmatpush.msra.mxu0 %v1577
        %1662 = vmatpush.msra.mxu0 %v1569
        %1663 = vmatpush.msra.mxu0 %v1561
        %1664 = vmatpush.msra.mxu0 %v1553
        %1665 = vmatpush.msra.mxu0 %v1545
        %1666 = vmatpush.msra.mxu0 %v1537
        %1667 = vmatpush.msra.mxu0 %v1529
        %1668 = vmatpush.msra.mxu0 %v1521
        %1669 = vmatpush.msra.mxu0 %v1513
        %1670 = vmatpush.msra.mxu0 %v1505
        %1671 = vmatmul.f32.gmra.mxu0 %v1632
        %v1672 = vpop.f32.mrf.mxu0
        %v1673 = vadd.f32 %v1634, %v1672
        %1674 = vdwg.mxu0
        %1675 = vmatpush.msra.mxu0 %v1626
        %1676 = vmatpush.msra.mxu0 %v1618
        %1677 = vmatpush.msra.mxu0 %v1610
        %1678 = vmatpush.msra.mxu0 %v1602
        %1679 = vmatpush.msra.mxu0 %v1594
        %1680 = vmatpush.msra.mxu0 %v1586
        %1681 = vmatpush.msra.mxu0 %v1578
        %1682 = vmatpush.msra.mxu0 %v1570
        %1683 = vmatpush.msra.mxu0 %v1562
        %1684 = vmatpush.msra.mxu0 %v1554
        %1685 = vmatpush.msra.mxu0 %v1546
        %1686 = vmatpush.msra.mxu0 %v1538
        %1687 = vmatpush.msra.mxu0 %v1530
        %1688 = vmatpush.msra.mxu0 %v1522
        %1689 = vmatpush.msra.mxu0 %v1514
        %1690 = vmatpush.msra.mxu0 %v1506
        %1691 = vmatmul.f32.gmra.mxu0 %v1632
        %v1692 = vpop.f32.mrf.mxu0
        %v1693 = vadd.f32 %v1634, %v1692
        %1694 = vdwg.mxu0
        %1695 = vmatpush.msra.mxu0 %v1627
        %1696 = vmatpush.msra.mxu0 %v1619
        %1697 = vmatpush.msra.mxu0 %v1611
        %1698 = vmatpush.msra.mxu0 %v1603
        %1699 = vmatpush.msra.mxu0 %v1595
        %1700 = vmatpush.msra.mxu0 %v1587
        %1701 = vmatpush.msra.mxu0 %v1579
        %1702 = vmatpush.msra.mxu0 %v1571
        %1703 = vmatpush.msra.mxu0 %v1563
        %1704 = vmatpush.msra.mxu0 %v1555
        %1705 = vmatpush.msra.mxu0 %v1547
        %1706 = vmatpush.msra.mxu0 %v1539
        %1707 = vmatpush.msra.mxu0 %v1531
        %1708 = vmatpush.msra.mxu0 %v1523
        %1709 = vmatpush.msra.mxu0 %v1515
        %1710 = vmatpush.msra.mxu0 %v1507
        %1711 = vmatmul.f32.gmra.mxu0 %v1632
        %v1712 = vpop.f32.mrf.mxu0
        %v1713 = vadd.f32 %v1634, %v1712
        %1714 = vdwg.mxu0
        %1715 = vmatpush.msra.mxu0 %v1628
        %1716 = vmatpush.msra.mxu0 %v1620
        %1717 = vmatpush.msra.mxu0 %v1612
        %1718 = vmatpush.msra.mxu0 %v1604
        %1719 = vmatpush.msra.mxu0 %v1596
        %1720 = vmatpush.msra.mxu0 %v1588
        %1721 = vmatpush.msra.mxu0 %v1580
        %1722 = vmatpush.msra.mxu0 %v1572
        %1723 = vmatpush.msra.mxu0 %v1564
        %1724 = vmatpush.msra.mxu0 %v1556
        %1725 = vmatpush.msra.mxu0 %v1548
        %1726 = vmatpush.msra.mxu0 %v1540
        %1727 = vmatpush.msra.mxu0 %v1532
        %1728 = vmatpush.msra.mxu0 %v1524
        %1729 = vmatpush.msra.mxu0 %v1516
        %1730 = vmatpush.msra.mxu0 %v1508
        %1731 = vmatmul.f32.gmra.mxu0 %v1632
        %v1732 = vpop.f32.mrf.mxu0
        %v1733 = vadd.f32 %v1634, %v1732
        %1734 = vdwg.mxu0
        %1735 = vmatpush.msra.mxu0 %v1629
        %1736 = vmatpush.msra.mxu0 %v1621
        %1737 = vmatpush.msra.mxu0 %v1613
        %1738 = vmatpush.msra.mxu0 %v1605
        %1739 = vmatpush.msra.mxu0 %v1597
        %1740 = vmatpush.msra.mxu0 %v1589
        %1741 = vmatpush.msra.mxu0 %v1581
        %1742 = vmatpush.msra.mxu0 %v1573
        %1743 = vmatpush.msra.mxu0 %v1565
        %1744 = vmatpush.msra.mxu0 %v1557
        %1745 = vmatpush.msra.mxu0 %v1549
        %1746 = vmatpush.msra.mxu0 %v1541
        %1747 = vmatpush.msra.mxu0 %v1533
        %1748 = vmatpush.msra.mxu0 %v1525
        %1749 = vmatpush.msra.mxu0 %v1517
        %1750 = vmatpush.msra.mxu0 %v1509
        %1751 = vmatmul.f32.gmra.mxu0 %v1632
        %v1752 = vpop.f32.mrf.mxu0
        %v1753 = vadd.f32 %v1634, %v1752
        %1754 = vdwg.mxu0
        %1755 = vmatpush.msra.mxu0 %v1630
        %1756 = vmatpush.msra.mxu0 %v1622
        %1757 = vmatpush.msra.mxu0 %v1614
        %1758 = vmatpush.msra.mxu0 %v1606
        %1759 = vmatpush.msra.mxu0 %v1598
        %1760 = vmatpush.msra.mxu0 %v1590
        %1761 = vmatpush.msra.mxu0 %v1582
        %1762 = vmatpush.msra.mxu0 %v1574
        %1763 = vmatpush.msra.mxu0 %v1566
        %1764 = vmatpush.msra.mxu0 %v1558
        %1765 = vmatpush.msra.mxu0 %v1550
        %1766 = vmatpush.msra.mxu0 %v1542
        %1767 = vmatpush.msra.mxu0 %v1534
        %1768 = vmatpush.msra.mxu0 %v1526
        %1769 = vmatpush.msra.mxu0 %v1518
        %1770 = vmatpush.msra.mxu0 %v1510
        %1771 = vmatmul.f32.gmra.mxu0 %v1632
        %v1772 = vpop.f32.mrf.mxu0
        %v1773 = vadd.f32 %v1634, %v1772
        %1774 = vdwg.mxu0
        %1775 = vmatpush.msra.mxu0 %v1631
        %1776 = vmatpush.msra.mxu0 %v1623
        %1777 = vmatpush.msra.mxu0 %v1615
        %1778 = vmatpush.msra.mxu0 %v1607
        %1779 = vmatpush.msra.mxu0 %v1599
        %1780 = vmatpush.msra.mxu0 %v1591
        %1781 = vmatpush.msra.mxu0 %v1583
        %1782 = vmatpush.msra.mxu0 %v1575
        %1783 = vmatpush.msra.mxu0 %v1567
        %1784 = vmatpush.msra.mxu0 %v1559
        %1785 = vmatpush.msra.mxu0 %v1551
        %1786 = vmatpush.msra.mxu0 %v1543
        %1787 = vmatpush.msra.mxu0 %v1535
        %1788 = vmatpush.msra.mxu0 %v1527
        %1789 = vmatpush.msra.mxu0 %v1519
        %1790 = vmatpush.msra.mxu0 %v1511
        %1791 = vmatmul.f32.gmra.mxu0 %v1632
        %v1792 = vpop.f32.mrf.mxu0
        %v1793 = vadd.f32 %v1634, %v1792
        %1794 = vdwg.mxu0
        %vm1795 = vcmp.gt.f32.partialorder %v1653, 20.0
        %vm1796 = vcmp.gt.f32.partialorder %v1673, 20.0
        %vm1797 = vcmp.gt.f32.partialorder %v1693, 20.0
        %vm1798 = vcmp.gt.f32.partialorder %v1713, 20.0
        %vm1799 = vcmp.gt.f32.partialorder %v1733, 20.0
        %vm1800 = vcmp.gt.f32.partialorder %v1753, 20.0
        %vm1801 = vcmp.gt.f32.partialorder %v1773, 20.0
        %vm1802 = vcmp.gt.f32.partialorder %v1793, 20.0
        %v1803 = vmin.f32 %v1653, 20.0
        %v1804 = vmin.f32 %v1673, 20.0
        %v1805 = vmin.f32 %v1693, 20.0
        %v1806 = vmin.f32 %v1713, 20.0
        %v1807 = vmin.f32 %v1733, 20.0
        %v1808 = vmin.f32 %v1753, 20.0
        %v1809 = vmin.f32 %v1773, 20.0
        %v1810 = vmin.f32 %v1793, 20.0
        %v1811 = vmul.f32 %v1803, 1.442695
        %v1812 = vpow.pop %v1811
        %v1813 = vmul.f32 %v1804, 1.442695
        %v1814 = vpow.pop %v1813
        %v1815 = vmul.f32 %v1805, 1.442695
        %v1816 = vpow.pop %v1815
        %v1817 = vmul.f32 %v1806, 1.442695
        %v1818 = vpow.pop %v1817
        %v1819 = vmul.f32 %v1807, 1.442695
        %v1820 = vpow.pop %v1819
        %v1821 = vmul.f32 %v1808, 1.442695
        %v1822 = vpow.pop %v1821
        %v1823 = vmul.f32 %v1809, 1.442695
        %v1824 = vpow.pop %v1823
        %v1825 = vmul.f32 %v1810, 1.442695
        %v1826 = vpow.pop %v1825
        %v1827 = vadd.f32 %v1812, 1.0
        %v1828 = vlog2.pop %v1827
        %v1829 = vmul.f32 %v1828, 0.6931472
        %v1830 = vmul.f32 -0.5, %v1812
        %v1831 = vadd.f32 %v1830, 1.0
        %v1832 = vmul.f32 %v1831, %v1812
        %v1833 = vand.u32 2147483647, %v1812
        %vm1834 = vcmp.lt.f32.partialorder %v1833, 0.0004427343
        %v1835 = vsel %vm1834, %v1832, %v1829
        %v1836 = vadd.f32 %v1814, 1.0
        %v1837 = vlog2.pop %v1836
        %v1838 = vmul.f32 %v1837, 0.6931472
        %v1839 = vmul.f32 -0.5, %v1814
        %v1840 = vadd.f32 %v1839, 1.0
        %v1841 = vmul.f32 %v1840, %v1814
        %v1842 = vand.u32 2147483647, %v1814
        %vm1843 = vcmp.lt.f32.partialorder %v1842, 0.0004427343
        %v1844 = vsel %vm1843, %v1841, %v1838
        %v1845 = vadd.f32 %v1816, 1.0
        %v1846 = vlog2.pop %v1845
        %v1847 = vmul.f32 %v1846, 0.6931472
        %v1848 = vmul.f32 -0.5, %v1816
        %v1849 = vadd.f32 %v1848, 1.0
        %v1850 = vmul.f32 %v1849, %v1816
        %v1851 = vand.u32 2147483647, %v1816
        %vm1852 = vcmp.lt.f32.partialorder %v1851, 0.0004427343
        %v1853 = vsel %vm1852, %v1850, %v1847
        %v1854 = vadd.f32 %v1818, 1.0
        %v1855 = vlog2.pop %v1854
        %v1856 = vmul.f32 %v1855, 0.6931472
        %v1857 = vmul.f32 -0.5, %v1818
        %v1858 = vadd.f32 %v1857, 1.0
        %v1859 = vmul.f32 %v1858, %v1818
        %v1860 = vand.u32 2147483647, %v1818
        %vm1861 = vcmp.lt.f32.partialorder %v1860, 0.0004427343
        %v1862 = vsel %vm1861, %v1859, %v1856
        %v1863 = vadd.f32 %v1820, 1.0
        %v1864 = vlog2.pop %v1863
        %v1865 = vmul.f32 %v1864, 0.6931472
        %v1866 = vmul.f32 -0.5, %v1820
        %v1867 = vadd.f32 %v1866, 1.0
        %v1868 = vmul.f32 %v1867, %v1820
        %v1869 = vand.u32 2147483647, %v1820
        %vm1870 = vcmp.lt.f32.partialorder %v1869, 0.0004427343
        %v1871 = vsel %vm1870, %v1868, %v1865
        %v1872 = vadd.f32 %v1822, 1.0
        %v1873 = vlog2.pop %v1872
        %v1874 = vmul.f32 %v1873, 0.6931472
        %v1875 = vmul.f32 -0.5, %v1822
        %v1876 = vadd.f32 %v1875, 1.0
        %v1877 = vmul.f32 %v1876, %v1822
        %v1878 = vand.u32 2147483647, %v1822
        %vm1879 = vcmp.lt.f32.partialorder %v1878, 0.0004427343
        %v1880 = vsel %vm1879, %v1877, %v1874
        %v1881 = vadd.f32 %v1824, 1.0
        %v1882 = vlog2.pop %v1881
        %v1883 = vmul.f32 %v1882, 0.6931472
        %v1884 = vmul.f32 -0.5, %v1824
        %v1885 = vadd.f32 %v1884, 1.0
        %v1886 = vmul.f32 %v1885, %v1824
        %v1887 = vand.u32 2147483647, %v1824
        %vm1888 = vcmp.lt.f32.partialorder %v1887, 0.0004427343
        %v1889 = vsel %vm1888, %v1886, %v1883
        %v1890 = vadd.f32 %v1826, 1.0
        %v1891 = vlog2.pop %v1890
        %v1892 = vmul.f32 %v1891, 0.6931472
        %v1893 = vmul.f32 -0.5, %v1826
        %v1894 = vadd.f32 %v1893, 1.0
        %v1895 = vmul.f32 %v1894, %v1826
        %v1896 = vand.u32 2147483647, %v1826
        %vm1897 = vcmp.lt.f32.partialorder %v1896, 0.0004427343
        %v1898 = vsel %vm1897, %v1895, %v1892
        %v1899 = vsel %vm1795, %v1653, %v1835
        %v1900 = vsel %vm1796, %v1673, %v1844
        %v1901 = vsel %vm1797, %v1693, %v1853
        %v1902 = vsel %vm1798, %v1713, %v1862
        %v1903 = vsel %vm1799, %v1733, %v1871
        %v1904 = vsel %vm1800, %v1753, %v1880
        %v1905 = vsel %vm1801, %v1773, %v1889
        %v1906 = vsel %vm1802, %v1793, %v1898
        %v1915 = vrot.slane %v1900, 7
        %v1916 = vrot.slane %v1901, 6
        %v1917 = vrot.slane %v1902, 5
        %v1918 = vrot.slane %v1903, 4
        %v1919 = vrot.slane %v1904, 3
        %v1920 = vrot.slane %v1905, 2
        %v1921 = vrot.slane %v1906, 1
        %vm1922 = vcmask 1040384
        %v1923 = vsel %vm1922, %v1899, %v1915
        %vm1924 = vcmask 1042434
        %v1925 = vsel %vm1924, %v1916, %v1917
        %vm1926 = vcmask 1041408
        %v1927 = vsel %vm1926, %v1923, %v1925
        %vm1928 = vcmask 1044484
        %v1929 = vsel %vm1928, %v1918, %v1919
        %vm1930 = vcmask 1046534
        %v1931 = vsel %vm1930, %v1920, %v1921
        %vm1932 = vcmask 1045508
        %v1933 = vsel %vm1932, %v1929, %v1931
        %vm1934 = vcmask 1043456
        %v1935 = vsel %vm1934, %v1927, %v1933
        %1937 = vst [vmem:[%s271] sm:$0xff] %v1935
        %s1938 = sand.u32 %s182, 1
        %s1939 = scalar_lea.sflag [#allocation4], %s1938
        %s1940 = sand.u32 %s182, 1
        %s1941 = smul.addr %s1940, 8
        %s1942 = scalar_lea.vmem [#allocation3], %s1941
        // Predicated region
        $region49: #{tpu_custom_call.1} parent=47 // pred_check
          %p1943 = pneg %p192
        $region50: #{tpu_custom_call.1} parent=47 // pred_check_branch
          %1945 = sbr.rel (%p1943) target = $region52
        $region51: #{tpu_custom_call.1} parent=47 // pred_region
          %s1946 = smul.u32 8, %s22
          %1948 = vsyncadd %s1939, 0
          %s1949 = scalar_lea.hbm %s7, %s1946
          %s1951 = sshll.u32 %s1942, 4
          %s1952 = int_to_ptr.vmem [resolvable:$true] %s1951
          %s1953 = sshll.u32 %s1949, 4
          %s1954 = int_to_ptr.hbm [resolvable:$true] %s1953
          %1956 = dma.vmem_to_hbm [thread:$0]  %s1952, 128, %s1954, %s1939
        $region52: #{tpu_custom_call.1} parent=47 // pred_fallthru
          _
      $region48: #{tpu_custom_call.1} parent=5 // pred_fallthru
        _
      %p1957 = scmp.le.s32.totalorder 2, %s17
      // Predicated region
      $region53: #{tpu_custom_call.1} parent=5 // pred_check
        %p1958 = pneg %p1957
      $region54: #{tpu_custom_call.1} parent=5 // pred_check_branch
        %1960 = sbr.rel (%p1958) target = $region56
      $region55: #{tpu_custom_call.1} parent=5 // pred_region
        %s1961 = ssub.s32 %s17, 2
        // Predicated region
        $region57: #{tpu_custom_call.1} parent=55 // pred_check
          %p1962 = pneg %p198
        $region58: #{tpu_custom_call.1} parent=55 // pred_check_branch
          %1964 = sbr.rel (%p1962) target = $region60
        $region59: #{tpu_custom_call.1} parent=55 // pred_region
          %s1965 = sand.u32 %s183, 1
          %s1966 = scalar_lea.sflag [#allocation4], %s1965
          %s1967 = sand.u32 %s183, 1
          %s1968 = smul.addr %s1967, 8
          %s1969 = scalar_lea.vmem [#allocation3], %s1968
          %1971 = dma.done %s1966, 128
        $region60: #{tpu_custom_call.1} parent=55 // pred_fallthru
          _
      $region56: #{tpu_custom_call.1} parent=5 // pred_fallthru
        _
    $region6: #{tpu_custom_call.1} parent=1 // loop_footer
      %s21 = sadd.s32 1, %s17
    $region7: #{tpu_custom_call.1} parent=1 // loop_footer_branch
      %16 = sbr.rel target = $region3
    $region8: #{tpu_custom_call.1} parent=1 // loop_exit
      _
    %1972 = vsyncpa [#allocation4], 1
    %s1973 = scalar_lea.sflag [#allocation4], 1
    %1974 = vsyncpa %s1973, 1

</llo_original>
